<compile_context>
chip_gen: v5e
topology: v5e:2x2
jax: 0.10.0
libtpu: 0.0.40
codegen_flags: <defaults>
</compile_context>

<pallas_src>
import functools

import numpy as np
import jax
import jax.numpy as jnp
from jax import lax
from jax.experimental import pallas as pl
from jax.experimental.pallas import tpu as pltpu


# --------------------------------------------------------------------------- #
# Kernel
# --------------------------------------------------------------------------- #
def _token_learner_kernel(H, W, C, S, layers, chunk, n_masks, *refs):
    """One chunk of images per grid step.

    refs = (x_ref, mask_refs..., w_refs..., out_ref, patch_ref)
      x_ref     : (C, chunk*HW)        images, batch folded into the lane axis
      mask_refs : (9*C, chunk*HW) [, (9*S, chunk*HW)]   halo masks (resident)
      w_refs    : (Cout, 9*Cin)        im2col-reshaped conv weights (resident)
      out_ref   : (chunk, S, C)
      patch_ref : (9*max(C,S), chunk*HW)  persistent VMEM scratch
    """
    idx = 0
    x_ref = refs[idx]; idx += 1
    mask_refs = refs[idx: idx + n_masks]; idx += n_masks
    w_refs = refs[idx: idx + 1 + layers]; idx += 1 + layers
    out_ref = refs[idx]; idx += 1
    patch_ref = refs[idx]

    HW = H * W
    L = chunk * HW
    f32 = jnp.float32

    x = x_ref[...]                                          # (C, L) f32

    def conv3x3(y, cin, w_ref, mask_ref):
        # im2col: write the 9 shifted taps directly into the persistent VMEM
        # scratch (no concat copy pass).  Rolls use the XLU slot; wrap-around
        # across image boundaries is harmless because those positions are
        # exactly the ones zeroed by the halo mask.  A single lane-dense
        # multiply applies all 9 boundary masks, then one MXU matmul with the
        # (Cout, 9*cin) pre-reshaped weight produces the conv output.
        for t in range(9):
            dy, dx = t // 3, t % 3
            o = (dy - 1) * W + (dx - 1)                     # flat spatial offset
            tap = y if o == 0 else pltpu.roll(y, shift=(-o) % L, axis=1)
            patch_ref[pl.ds(t * cin, cin), :] = tap
        patch = patch_ref[pl.ds(0, 9 * cin), :] * mask_ref[...]   # (9*cin, L)
        return jnp.dot(w_ref[...], patch,
                       preferred_element_type=f32)          # (Cout, L)

    # ---- conv 0 + [SiLU, conv] * layers (all math f32) ----------------------
    y = conv3x3(x, C, w_refs[0], mask_refs[0])              # (S, L)
    for li in range(layers):
        y = conv3x3(jax.nn.silu(y), S, w_refs[1 + li], mask_refs[-1])

    attn = jax.nn.sigmoid(y)                                # (S, L)

    # ---- per-image weighted mean over spatial positions ----------------------
    # out[b, s, c] = (1/HW) * sum_q attn[s, b*HW + q] * x[c, b*HW + q]
    inv = f32(1.0 / HW)
    for b in range(chunk):                                  # static, small
        lo, hi = b * HW, (b + 1) * HW                       # vreg-aligned slices
        a_b = attn[:, lo:hi]                                # (S, HW)
        x_b = x[:, lo:hi]                                   # (C, HW)
        out_b = lax.dot_general(a_b, x_b, (((1,), (1,)), ((), ())),
                                preferred_element_type=f32)  # (S, C)
        out_ref[b] = (out_b * inv).astype(out_ref.dtype)


# --------------------------------------------------------------------------- #
# Wrapper helpers
# --------------------------------------------------------------------------- #
def _reshape_w(w):
    """HWIO (3,3,Cin,Cout) -> im2col (Cout, 9*Cin), tap order dy-outer/dx/cin."""
    cout = w.shape[3]
    return jnp.transpose(w, (3, 0, 1, 2)).reshape(cout, -1).astype(jnp.float32)


def _build_tap_mask(H, W, cin, chunk):
    """(9*cin, chunk*HW) f32 mask: zero where the 3x3 tap falls outside the image."""
    HW = H * W
    q = np.arange(HW)
    h, w = q // W, q % W
    rows = []
    for dy in range(3):
        for dx in range(3):
            valid = np.ones(HW, dtype=bool)
            if dy == 0:
                valid &= h >= 1
            if dy == 2:
                valid &= h <= H - 2
            if dx == 0:
                valid &= w >= 1
            if dx == 2:
                valid &= w <= W - 2
            rows.append(np.repeat(valid[None, :].astype(np.float32), cin, axis=0))
    m = np.concatenate(rows, axis=0)                 # (9*cin, HW)
    return jnp.asarray(np.tile(m, (1, chunk)))       # tiled across images in a chunk


def _default_target_steps():
    """>= 2 grid steps on 2-TensorCore chips (v7x/v4/v5p); 1 on v5e/v6e."""
    try:
        kind = jax.devices()[0].device_kind.lower()
    except Exception:
        return 2
    single_tc = any(t in kind for t in
                    ("v5e", "v5 lite", "v5lite", "v6e", "v6 lite", "v6lite"))
    return 1 if single_tc else 2


def _choose_chunk(B, C, S, HW, n_masks, target_steps, vmem_budget_bytes):
    """Images per grid step, capped by a rough per-image VMEM working-set model."""
    m = max(C, S)
    per_img = (2 * C            # input block (double buffered)
               + 9 * m          # patch scratch
               + 9 * m          # masked-patch temporary
               + 3 * S + C      # activations / attn
               + 2 * 9 * (C + (S if n_masks == 2 else 0))   # resident masks (x2 buf)
               ) * HW * 4
    max_chunk = max(1, int(vmem_budget_bytes // per_img))
    steps = max(1, min(B, target_steps))
    chunk = max(1, min(max_chunk, pl.cdiv(B, steps)))
    steps = pl.cdiv(B, chunk)
    return chunk, steps


# --------------------------------------------------------------------------- #
# Forward
# --------------------------------------------------------------------------- #
def token_learner_forward(x_nchw, weights, *, target_steps=None,
                          vmem_budget_bytes=16 << 20):
    """x_nchw: (B, C, H, W) f32.  weights: [w0 (3,3,C,S), w1..wL (3,3,S,S)] HWIO."""
    B, C, H, W = x_nchw.shape
    S = weights[0].shape[-1]
    layers = len(weights) - 1
    HW = H * W

    n_masks = 1 if (layers == 0 or C == S) else 2
    if target_steps is None:
        target_steps = _default_target_steps()
    chunk, steps = _choose_chunk(B, C, S, HW, n_masks, target_steps,
                                 vmem_budget_bytes)
    B_pad = chunk * steps
    L = chunk * HW

    # glue: pad batch to a whole number of chunks, fold batch into the lane axis
    x = x_nchw.astype(jnp.float32).reshape(B, C, HW)
    if B_pad > B:
        x = jnp.concatenate([x, jnp.zeros((B_pad - B, C, HW), jnp.float32)], 0)
    x_flat = jnp.transpose(x, (1, 0, 2)).reshape(C, B_pad * HW)   # (C, B_pad*HW)

    w2d = [_reshape_w(w) for w in weights]                        # (Cout, 9*Cin)
    masks = [_build_tap_mask(H, W, C, chunk)]
    if n_masks == 2:
        masks.append(_build_tap_mask(H, W, S, chunk))

    kernel = functools.partial(_token_learner_kernel,
                               H, W, C, S, layers, chunk, n_masks)

    in_specs = [pl.BlockSpec((C, L), lambda i: (0, i))]           # per-chunk images
    in_specs += [pl.BlockSpec(m.shape, lambda i: (0, 0)) for m in masks]  # resident
    in_specs += [pl.BlockSpec(w.shape, lambda i: (0, 0)) for w in w2d]    # resident

    out = pl.pallas_call(
        kernel,
        out_shape=jax.ShapeDtypeStruct((B_pad, S, C), jnp.float32),
        grid=(steps,),
        in_specs=in_specs,
        out_specs=pl.BlockSpec((chunk, S, C), lambda i: (i, 0, 0)),
        scratch_shapes=[pltpu.VMEM((9 * max(C, S), L), jnp.float32)],
        compiler_params=pltpu.CompilerParams(
            dimension_semantics=("parallel",)),
    )(x_flat, *masks, *w2d)
    return out[:B]


# ---------------- deterministic parameter init (xavier uniform) --------------
def init_token_learner_weights(key, C, S, layers):
    shapes = [(3, 3, C, S)] + [(3, 3, S, S)] * layers
    ws = []
    for shp in shapes:
        kh, kw, cin, cout = shp
        fan_in, fan_out = cin * kh * kw, cout * kh * kw
        bound = float(np.sqrt(6.0 / (fan_in + fan_out)))
        key, sub = jax.random.split(key)
        ws.append(jax.random.uniform(sub, shp, jnp.float32, -bound, bound))
    return ws


# ---------------- pure-JAX reference (sanity check) ---------------------------
def token_learner_ref(x_nchw, weights):
    x = jnp.transpose(x_nchw, (0, 2, 3, 1)).astype(jnp.float32)   # NHWC
    dn = ('NHWC', 'HWIO', 'NHWC')
    a = lax.conv_general_dilated(x, weights[0], (1, 1), 'SAME',
                                 dimension_numbers=dn,
                                 precision=lax.Precision.HIGHEST)
    for w in weights[1:]:
        a = jax.nn.silu(a)
        a = lax.conv_general_dilated(a, w, (1, 1), 'SAME',
                                     dimension_numbers=dn,
                                     precision=lax.Precision.HIGHEST)
    attn = jax.nn.sigmoid(a)                                      # (B,H,W,S)
    return jnp.einsum('bhws,bhwc->bsc', attn, x) / (x.shape[1] * x.shape[2])


if __name__ == "__main__":
    C, H, W = 8, 16, 16
    S, layers = 8, 3

    key = jax.random.PRNGKey(0)
    key, kw = jax.random.split(key)
    weights = init_token_learner_weights(kw, C, S, layers)

    # Case 1: small canonical batch.
    key, kx = jax.random.split(key)
    x = jax.random.normal(kx, (2, C, H, W), jnp.float32)
    out = jax.block_until_ready(token_learner_forward(x, weights))
    assert out.shape == (2, S, C), out.shape
    ref = jax.block_until_ready(token_learner_ref(x, weights))
    np.testing.assert_allclose(np.asarray(out), np.asarray(ref),
                               atol=5e-3, rtol=5e-3)

    # Case 2: exercises batch folding (>1 image per grid step) and the
    # batch-padding path when B is not a multiple of the chosen chunk.
    key, kx2 = jax.random.split(key)
    x2 = jax.random.normal(kx2, (5, C, H, W), jnp.float32)
    out2 = jax.block_until_ready(token_learner_forward(x2, weights))
    assert out2.shape == (5, S, C), out2.shape
    ref2 = jax.block_until_ready(token_learner_ref(x2, weights))
    np.testing.assert_allclose(np.asarray(out2), np.asarray(ref2),
                               atol=5e-3, rtol=5e-3)

    print("KERNEL_OK")
</pallas_src>

<mosaic_0001>
module attributes {stable_mosaic.version = 11 : i64} {
  func.func @_token_learner_kernel(%arg0: i32, %arg1: memref<8x256xf32, #tpu.memory_space<vmem>>, %arg2: memref<72x256xf32, #tpu.memory_space<vmem>>, %arg3: memref<8x72xf32, #tpu.memory_space<vmem>>, %arg4: memref<8x72xf32, #tpu.memory_space<vmem>>, %arg5: memref<8x72xf32, #tpu.memory_space<vmem>>, %arg6: memref<8x72xf32, #tpu.memory_space<vmem>>, %arg7: memref<1x8x8xf32, #tpu.memory_space<vmem>>, %arg8: memref<72x256xf32, #tpu.memory_space<vmem>>) attributes {dimension_semantics = [#tpu.dimension_semantics<parallel>], iteration_bounds = array<i64: 2>, scalar_prefetch = 0 : i64, scratch_operands = 1 : i64, tpu.core_type = #tpu.core_type<tc>, window_params = [{transform_indices = @transform_0, window_bounds = array<i64: 8, 256>}, {pipeline_mode = #tpu.pipeline_mode<synchronous>, transform_indices = @transform_1, window_bounds = array<i64: 72, 256>}, {pipeline_mode = #tpu.pipeline_mode<synchronous>, transform_indices = @transform_2, window_bounds = array<i64: 8, 72>}, {pipeline_mode = #tpu.pipeline_mode<synchronous>, transform_indices = @transform_3, window_bounds = array<i64: 8, 72>}, {pipeline_mode = #tpu.pipeline_mode<synchronous>, transform_indices = @transform_4, window_bounds = array<i64: 8, 72>}, {pipeline_mode = #tpu.pipeline_mode<synchronous>, transform_indices = @transform_5, window_bounds = array<i64: 8, 72>}, {transform_indices = @transform_6, window_bounds = array<i64: 1, 8, 8>}]} {
    %c0 = arith.constant 0 : index
    %c0_0 = arith.constant 0 : index
    %0 = vector.load %arg1[%c0, %c0_0] : memref<8x256xf32, #tpu.memory_space<vmem>>, vector<8x256xf32>
    %c17_i32 = arith.constant 17 : i32
    %1 = tpu.dynamic_rotate %0 by %c17_i32 dim 1 : vector<8x256xf32>, i32 -> vector<8x256xf32>
    %c0_1 = arith.constant 0 : index
    %c0_2 = arith.constant 0 : index
    %2 = vector.load %arg8[%c0_1, %c0_2] : memref<72x256xf32, #tpu.memory_space<vmem>>, vector<8x256xf32>
    tpu.vector_store %arg8[%c0_1, %c0_2], %1 {strides = array<i32>} : memref<72x256xf32, #tpu.memory_space<vmem>>, vector<8x256xf32>,
    %c16_i32 = arith.constant 16 : i32
    %3 = tpu.dynamic_rotate %0 by %c16_i32 dim 1 : vector<8x256xf32>, i32 -> vector<8x256xf32>
    %c8 = arith.constant 8 : index
    %c0_3 = arith.constant 0 : index
    %4 = vector.load %arg8[%c8, %c0_3] : memref<72x256xf32, #tpu.memory_space<vmem>>, vector<8x256xf32>
    tpu.vector_store %arg8[%c8, %c0_3], %3 {strides = array<i32>} : memref<72x256xf32, #tpu.memory_space<vmem>>, vector<8x256xf32>,
    %c15_i32 = arith.constant 15 : i32
    %5 = tpu.dynamic_rotate %0 by %c15_i32 dim 1 : vector<8x256xf32>, i32 -> vector<8x256xf32>
    %c16 = arith.constant 16 : index
    %c0_4 = arith.constant 0 : index
    %6 = vector.load %arg8[%c16, %c0_4] : memref<72x256xf32, #tpu.memory_space<vmem>>, vector<8x256xf32>
    tpu.vector_store %arg8[%c16, %c0_4], %5 {strides = array<i32>} : memref<72x256xf32, #tpu.memory_space<vmem>>, vector<8x256xf32>,
    %c1_i32 = arith.constant 1 : i32
    %7 = tpu.dynamic_rotate %0 by %c1_i32 dim 1 : vector<8x256xf32>, i32 -> vector<8x256xf32>
    %c24 = arith.constant 24 : index
    %c0_5 = arith.constant 0 : index
    %8 = vector.load %arg8[%c24, %c0_5] : memref<72x256xf32, #tpu.memory_space<vmem>>, vector<8x256xf32>
    tpu.vector_store %arg8[%c24, %c0_5], %7 {strides = array<i32>} : memref<72x256xf32, #tpu.memory_space<vmem>>, vector<8x256xf32>,
    %c32 = arith.constant 32 : index
    %c0_6 = arith.constant 0 : index
    %9 = vector.load %arg8[%c32, %c0_6] : memref<72x256xf32, #tpu.memory_space<vmem>>, vector<8x256xf32>
    tpu.vector_store %arg8[%c32, %c0_6], %0 {strides = array<i32>} : memref<72x256xf32, #tpu.memory_space<vmem>>, vector<8x256xf32>,
    %c255_i32 = arith.constant 255 : i32
    %10 = tpu.dynamic_rotate %0 by %c255_i32 dim 1 : vector<8x256xf32>, i32 -> vector<8x256xf32>
    %c40 = arith.constant 40 : index
    %c0_7 = arith.constant 0 : index
    %11 = vector.load %arg8[%c40, %c0_7] : memref<72x256xf32, #tpu.memory_space<vmem>>, vector<8x256xf32>
    tpu.vector_store %arg8[%c40, %c0_7], %10 {strides = array<i32>} : memref<72x256xf32, #tpu.memory_space<vmem>>, vector<8x256xf32>,
    %c241_i32 = arith.constant 241 : i32
    %12 = tpu.dynamic_rotate %0 by %c241_i32 dim 1 : vector<8x256xf32>, i32 -> vector<8x256xf32>
    %c48 = arith.constant 48 : index
    %c0_8 = arith.constant 0 : index
    %13 = vector.load %arg8[%c48, %c0_8] : memref<72x256xf32, #tpu.memory_space<vmem>>, vector<8x256xf32>
    tpu.vector_store %arg8[%c48, %c0_8], %12 {strides = array<i32>} : memref<72x256xf32, #tpu.memory_space<vmem>>, vector<8x256xf32>,
    %c240_i32 = arith.constant 240 : i32
    %14 = tpu.dynamic_rotate %0 by %c240_i32 dim 1 : vector<8x256xf32>, i32 -> vector<8x256xf32>
    %c56 = arith.constant 56 : index
    %c0_9 = arith.constant 0 : index
    %15 = vector.load %arg8[%c56, %c0_9] : memref<72x256xf32, #tpu.memory_space<vmem>>, vector<8x256xf32>
    tpu.vector_store %arg8[%c56, %c0_9], %14 {strides = array<i32>} : memref<72x256xf32, #tpu.memory_space<vmem>>, vector<8x256xf32>,
    %c239_i32 = arith.constant 239 : i32
    %16 = tpu.dynamic_rotate %0 by %c239_i32 dim 1 : vector<8x256xf32>, i32 -> vector<8x256xf32>
    %c64 = arith.constant 64 : index
    %c0_10 = arith.constant 0 : index
    %17 = vector.load %arg8[%c64, %c0_10] : memref<72x256xf32, #tpu.memory_space<vmem>>, vector<8x256xf32>
    tpu.vector_store %arg8[%c64, %c0_10], %16 {strides = array<i32>} : memref<72x256xf32, #tpu.memory_space<vmem>>, vector<8x256xf32>,
    %c0_11 = arith.constant 0 : index
    %c0_12 = arith.constant 0 : index
    %18 = vector.load %arg8[%c0_11, %c0_12] : memref<72x256xf32, #tpu.memory_space<vmem>>, vector<72x256xf32>
    %c0_13 = arith.constant 0 : index
    %c0_14 = arith.constant 0 : index
    %19 = vector.load %arg2[%c0_13, %c0_14] : memref<72x256xf32, #tpu.memory_space<vmem>>, vector<72x256xf32>
    %20 = arith.mulf %18, %19 : vector<72x256xf32>
    %c0_15 = arith.constant 0 : index
    %c0_16 = arith.constant 0 : index
    %21 = vector.load %arg3[%c0_15, %c0_16] : memref<8x72xf32, #tpu.memory_space<vmem>>, vector<8x72xf32>
    %cst = arith.constant dense<0.000000e+00> : vector<8x256xf32>
    %22 = tpu.matmul %21, %20, %cst {dimension_numbers = #tpu.dot_dimension_numbers<[1], [0], [0], [1], [0, 0, 1, 1], [], []>} : vector<8x72xf32>, vector<72x256xf32>, vector<8x256xf32> -> vector<8x256xf32>
    %23 = arith.negf %22 : vector<8x256xf32>
    %24 = math.exp %23 : vector<8x256xf32>
    %cst_17 = arith.constant 1.000000e+00 : f32
    %25 = vector.broadcast %cst_17 : f32 to vector<8x256xf32>
    %26 = arith.addf %25, %24 : vector<8x256xf32>
    %27 = arith.divf %25, %26 : vector<8x256xf32>
    %28 = arith.mulf %22, %27 : vector<8x256xf32>
    %c17_i32_18 = arith.constant 17 : i32
    %29 = tpu.dynamic_rotate %28 by %c17_i32_18 dim 1 : vector<8x256xf32>, i32 -> vector<8x256xf32>
    %c0_19 = arith.constant 0 : index
    %c0_20 = arith.constant 0 : index
    %30 = vector.load %arg8[%c0_19, %c0_20] : memref<72x256xf32, #tpu.memory_space<vmem>>, vector<8x256xf32>
    tpu.vector_store %arg8[%c0_19, %c0_20], %29 {strides = array<i32>} : memref<72x256xf32, #tpu.memory_space<vmem>>, vector<8x256xf32>,
    %c16_i32_21 = arith.constant 16 : i32
    %31 = tpu.dynamic_rotate %28 by %c16_i32_21 dim 1 : vector<8x256xf32>, i32 -> vector<8x256xf32>
    %c8_22 = arith.constant 8 : index
    %c0_23 = arith.constant 0 : index
    %32 = vector.load %arg8[%c8_22, %c0_23] : memref<72x256xf32, #tpu.memory_space<vmem>>, vector<8x256xf32>
    tpu.vector_store %arg8[%c8_22, %c0_23], %31 {strides = array<i32>} : memref<72x256xf32, #tpu.memory_space<vmem>>, vector<8x256xf32>,
    %c15_i32_24 = arith.constant 15 : i32
    %33 = tpu.dynamic_rotate %28 by %c15_i32_24 dim 1 : vector<8x256xf32>, i32 -> vector<8x256xf32>
    %c16_25 = arith.constant 16 : index
    %c0_26 = arith.constant 0 : index
    %34 = vector.load %arg8[%c16_25, %c0_26] : memref<72x256xf32, #tpu.memory_space<vmem>>, vector<8x256xf32>
    tpu.vector_store %arg8[%c16_25, %c0_26], %33 {strides = array<i32>} : memref<72x256xf32, #tpu.memory_space<vmem>>, vector<8x256xf32>,
    %c1_i32_27 = arith.constant 1 : i32
    %35 = tpu.dynamic_rotate %28 by %c1_i32_27 dim 1 : vector<8x256xf32>, i32 -> vector<8x256xf32>
    %c24_28 = arith.constant 24 : index
    %c0_29 = arith.constant 0 : index
    %36 = vector.load %arg8[%c24_28, %c0_29] : memref<72x256xf32, #tpu.memory_space<vmem>>, vector<8x256xf32>
    tpu.vector_store %arg8[%c24_28, %c0_29], %35 {strides = array<i32>} : memref<72x256xf32, #tpu.memory_space<vmem>>, vector<8x256xf32>,
    %c32_30 = arith.constant 32 : index
    %c0_31 = arith.constant 0 : index
    %37 = vector.load %arg8[%c32_30, %c0_31] : memref<72x256xf32, #tpu.memory_space<vmem>>, vector<8x256xf32>
    tpu.vector_store %arg8[%c32_30, %c0_31], %28 {strides = array<i32>} : memref<72x256xf32, #tpu.memory_space<vmem>>, vector<8x256xf32>,
    %c255_i32_32 = arith.constant 255 : i32
    %38 = tpu.dynamic_rotate %28 by %c255_i32_32 dim 1 : vector<8x256xf32>, i32 -> vector<8x256xf32>
    %c40_33 = arith.constant 40 : index
    %c0_34 = arith.constant 0 : index
    %39 = vector.load %arg8[%c40_33, %c0_34] : memref<72x256xf32, #tpu.memory_space<vmem>>, vector<8x256xf32>
    tpu.vector_store %arg8[%c40_33, %c0_34], %38 {strides = array<i32>} : memref<72x256xf32, #tpu.memory_space<vmem>>, vector<8x256xf32>,
    %c241_i32_35 = arith.constant 241 : i32
    %40 = tpu.dynamic_rotate %28 by %c241_i32_35 dim 1 : vector<8x256xf32>, i32 -> vector<8x256xf32>
    %c48_36 = arith.constant 48 : index
    %c0_37 = arith.constant 0 : index
    %41 = vector.load %arg8[%c48_36, %c0_37] : memref<72x256xf32, #tpu.memory_space<vmem>>, vector<8x256xf32>
    tpu.vector_store %arg8[%c48_36, %c0_37], %40 {strides = array<i32>} : memref<72x256xf32, #tpu.memory_space<vmem>>, vector<8x256xf32>,
    %c240_i32_38 = arith.constant 240 : i32
    %42 = tpu.dynamic_rotate %28 by %c240_i32_38 dim 1 : vector<8x256xf32>, i32 -> vector<8x256xf32>
    %c56_39 = arith.constant 56 : index
    %c0_40 = arith.constant 0 : index
    %43 = vector.load %arg8[%c56_39, %c0_40] : memref<72x256xf32, #tpu.memory_space<vmem>>, vector<8x256xf32>
    tpu.vector_store %arg8[%c56_39, %c0_40], %42 {strides = array<i32>} : memref<72x256xf32, #tpu.memory_space<vmem>>, vector<8x256xf32>,
    %c239_i32_41 = arith.constant 239 : i32
    %44 = tpu.dynamic_rotate %28 by %c239_i32_41 dim 1 : vector<8x256xf32>, i32 -> vector<8x256xf32>
    %c64_42 = arith.constant 64 : index
    %c0_43 = arith.constant 0 : index
    %45 = vector.load %arg8[%c64_42, %c0_43] : memref<72x256xf32, #tpu.memory_space<vmem>>, vector<8x256xf32>
    tpu.vector_store %arg8[%c64_42, %c0_43], %44 {strides = array<i32>} : memref<72x256xf32, #tpu.memory_space<vmem>>, vector<8x256xf32>,
    %c0_44 = arith.constant 0 : index
    %c0_45 = arith.constant 0 : index
    %46 = vector.load %arg8[%c0_44, %c0_45] : memref<72x256xf32, #tpu.memory_space<vmem>>, vector<72x256xf32>
    %c0_46 = arith.constant 0 : index
    %c0_47 = arith.constant 0 : index
    %47 = vector.load %arg2[%c0_46, %c0_47] : memref<72x256xf32, #tpu.memory_space<vmem>>, vector<72x256xf32>
    %48 = arith.mulf %46, %47 : vector<72x256xf32>
    %c0_48 = arith.constant 0 : index
    %c0_49 = arith.constant 0 : index
    %49 = vector.load %arg4[%c0_48, %c0_49] : memref<8x72xf32, #tpu.memory_space<vmem>>, vector<8x72xf32>
    %cst_50 = arith.constant dense<0.000000e+00> : vector<8x256xf32>
    %50 = tpu.matmul %49, %48, %cst_50 {dimension_numbers = #tpu.dot_dimension_numbers<[1], [0], [0], [1], [0, 0, 1, 1], [], []>} : vector<8x72xf32>, vector<72x256xf32>, vector<8x256xf32> -> vector<8x256xf32>
    %51 = arith.negf %50 : vector<8x256xf32>
    %52 = math.exp %51 : vector<8x256xf32>
    %cst_51 = arith.constant 1.000000e+00 : f32
    %53 = vector.broadcast %cst_51 : f32 to vector<8x256xf32>
    %54 = arith.addf %53, %52 : vector<8x256xf32>
    %55 = arith.divf %53, %54 : vector<8x256xf32>
    %56 = arith.mulf %50, %55 : vector<8x256xf32>
    %c17_i32_52 = arith.constant 17 : i32
    %57 = tpu.dynamic_rotate %56 by %c17_i32_52 dim 1 : vector<8x256xf32>, i32 -> vector<8x256xf32>
    %c0_53 = arith.constant 0 : index
    %c0_54 = arith.constant 0 : index
    %58 = vector.load %arg8[%c0_53, %c0_54] : memref<72x256xf32, #tpu.memory_space<vmem>>, vector<8x256xf32>
    tpu.vector_store %arg8[%c0_53, %c0_54], %57 {strides = array<i32>} : memref<72x256xf32, #tpu.memory_space<vmem>>, vector<8x256xf32>,
    %c16_i32_55 = arith.constant 16 : i32
    %59 = tpu.dynamic_rotate %56 by %c16_i32_55 dim 1 : vector<8x256xf32>, i32 -> vector<8x256xf32>
    %c8_56 = arith.constant 8 : index
    %c0_57 = arith.constant 0 : index
    %60 = vector.load %arg8[%c8_56, %c0_57] : memref<72x256xf32, #tpu.memory_space<vmem>>, vector<8x256xf32>
    tpu.vector_store %arg8[%c8_56, %c0_57], %59 {strides = array<i32>} : memref<72x256xf32, #tpu.memory_space<vmem>>, vector<8x256xf32>,
    %c15_i32_58 = arith.constant 15 : i32
    %61 = tpu.dynamic_rotate %56 by %c15_i32_58 dim 1 : vector<8x256xf32>, i32 -> vector<8x256xf32>
    %c16_59 = arith.constant 16 : index
    %c0_60 = arith.constant 0 : index
    %62 = vector.load %arg8[%c16_59, %c0_60] : memref<72x256xf32, #tpu.memory_space<vmem>>, vector<8x256xf32>
    tpu.vector_store %arg8[%c16_59, %c0_60], %61 {strides = array<i32>} : memref<72x256xf32, #tpu.memory_space<vmem>>, vector<8x256xf32>,
    %c1_i32_61 = arith.constant 1 : i32
    %63 = tpu.dynamic_rotate %56 by %c1_i32_61 dim 1 : vector<8x256xf32>, i32 -> vector<8x256xf32>
    %c24_62 = arith.constant 24 : index
    %c0_63 = arith.constant 0 : index
    %64 = vector.load %arg8[%c24_62, %c0_63] : memref<72x256xf32, #tpu.memory_space<vmem>>, vector<8x256xf32>
    tpu.vector_store %arg8[%c24_62, %c0_63], %63 {strides = array<i32>} : memref<72x256xf32, #tpu.memory_space<vmem>>, vector<8x256xf32>,
    %c32_64 = arith.constant 32 : index
    %c0_65 = arith.constant 0 : index
    %65 = vector.load %arg8[%c32_64, %c0_65] : memref<72x256xf32, #tpu.memory_space<vmem>>, vector<8x256xf32>
    tpu.vector_store %arg8[%c32_64, %c0_65], %56 {strides = array<i32>} : memref<72x256xf32, #tpu.memory_space<vmem>>, vector<8x256xf32>,
    %c255_i32_66 = arith.constant 255 : i32
    %66 = tpu.dynamic_rotate %56 by %c255_i32_66 dim 1 : vector<8x256xf32>, i32 -> vector<8x256xf32>
    %c40_67 = arith.constant 40 : index
    %c0_68 = arith.constant 0 : index
    %67 = vector.load %arg8[%c40_67, %c0_68] : memref<72x256xf32, #tpu.memory_space<vmem>>, vector<8x256xf32>
    tpu.vector_store %arg8[%c40_67, %c0_68], %66 {strides = array<i32>} : memref<72x256xf32, #tpu.memory_space<vmem>>, vector<8x256xf32>,
    %c241_i32_69 = arith.constant 241 : i32
    %68 = tpu.dynamic_rotate %56 by %c241_i32_69 dim 1 : vector<8x256xf32>, i32 -> vector<8x256xf32>
    %c48_70 = arith.constant 48 : index
    %c0_71 = arith.constant 0 : index
    %69 = vector.load %arg8[%c48_70, %c0_71] : memref<72x256xf32, #tpu.memory_space<vmem>>, vector<8x256xf32>
    tpu.vector_store %arg8[%c48_70, %c0_71], %68 {strides = array<i32>} : memref<72x256xf32, #tpu.memory_space<vmem>>, vector<8x256xf32>,
    %c240_i32_72 = arith.constant 240 : i32
    %70 = tpu.dynamic_rotate %56 by %c240_i32_72 dim 1 : vector<8x256xf32>, i32 -> vector<8x256xf32>
    %c56_73 = arith.constant 56 : index
    %c0_74 = arith.constant 0 : index
    %71 = vector.load %arg8[%c56_73, %c0_74] : memref<72x256xf32, #tpu.memory_space<vmem>>, vector<8x256xf32>
    tpu.vector_store %arg8[%c56_73, %c0_74], %70 {strides = array<i32>} : memref<72x256xf32, #tpu.memory_space<vmem>>, vector<8x256xf32>,
    %c239_i32_75 = arith.constant 239 : i32
    %72 = tpu.dynamic_rotate %56 by %c239_i32_75 dim 1 : vector<8x256xf32>, i32 -> vector<8x256xf32>
    %c64_76 = arith.constant 64 : index
    %c0_77 = arith.constant 0 : index
    %73 = vector.load %arg8[%c64_76, %c0_77] : memref<72x256xf32, #tpu.memory_space<vmem>>, vector<8x256xf32>
    tpu.vector_store %arg8[%c64_76, %c0_77], %72 {strides = array<i32>} : memref<72x256xf32, #tpu.memory_space<vmem>>, vector<8x256xf32>,
    %c0_78 = arith.constant 0 : index
    %c0_79 = arith.constant 0 : index
    %74 = vector.load %arg8[%c0_78, %c0_79] : memref<72x256xf32, #tpu.memory_space<vmem>>, vector<72x256xf32>
    %c0_80 = arith.constant 0 : index
    %c0_81 = arith.constant 0 : index
    %75 = vector.load %arg2[%c0_80, %c0_81] : memref<72x256xf32, #tpu.memory_space<vmem>>, vector<72x256xf32>
    %76 = arith.mulf %74, %75 : vector<72x256xf32>
    %c0_82 = arith.constant 0 : index
    %c0_83 = arith.constant 0 : index
    %77 = vector.load %arg5[%c0_82, %c0_83] : memref<8x72xf32, #tpu.memory_space<vmem>>, vector<8x72xf32>
    %cst_84 = arith.constant dense<0.000000e+00> : vector<8x256xf32>
    %78 = tpu.matmul %77, %76, %cst_84 {dimension_numbers = #tpu.dot_dimension_numbers<[1], [0], [0], [1], [0, 0, 1, 1], [], []>} : vector<8x72xf32>, vector<72x256xf32>, vector<8x256xf32> -> vector<8x256xf32>
    %79 = arith.negf %78 : vector<8x256xf32>
    %80 = math.exp %79 : vector<8x256xf32>
    %cst_85 = arith.constant 1.000000e+00 : f32
    %81 = vector.broadcast %cst_85 : f32 to vector<8x256xf32>
    %82 = arith.addf %81, %80 : vector<8x256xf32>
    %83 = arith.divf %81, %82 : vector<8x256xf32>
    %84 = arith.mulf %78, %83 : vector<8x256xf32>
    %c17_i32_86 = arith.constant 17 : i32
    %85 = tpu.dynamic_rotate %84 by %c17_i32_86 dim 1 : vector<8x256xf32>, i32 -> vector<8x256xf32>
    %c0_87 = arith.constant 0 : index
    %c0_88 = arith.constant 0 : index
    %86 = vector.load %arg8[%c0_87, %c0_88] : memref<72x256xf32, #tpu.memory_space<vmem>>, vector<8x256xf32>
    tpu.vector_store %arg8[%c0_87, %c0_88], %85 {strides = array<i32>} : memref<72x256xf32, #tpu.memory_space<vmem>>, vector<8x256xf32>,
    %c16_i32_89 = arith.constant 16 : i32
    %87 = tpu.dynamic_rotate %84 by %c16_i32_89 dim 1 : vector<8x256xf32>, i32 -> vector<8x256xf32>
    %c8_90 = arith.constant 8 : index
    %c0_91 = arith.constant 0 : index
    %88 = vector.load %arg8[%c8_90, %c0_91] : memref<72x256xf32, #tpu.memory_space<vmem>>, vector<8x256xf32>
    tpu.vector_store %arg8[%c8_90, %c0_91], %87 {strides = array<i32>} : memref<72x256xf32, #tpu.memory_space<vmem>>, vector<8x256xf32>,
    %c15_i32_92 = arith.constant 15 : i32
    %89 = tpu.dynamic_rotate %84 by %c15_i32_92 dim 1 : vector<8x256xf32>, i32 -> vector<8x256xf32>
    %c16_93 = arith.constant 16 : index
    %c0_94 = arith.constant 0 : index
    %90 = vector.load %arg8[%c16_93, %c0_94] : memref<72x256xf32, #tpu.memory_space<vmem>>, vector<8x256xf32>
    tpu.vector_store %arg8[%c16_93, %c0_94], %89 {strides = array<i32>} : memref<72x256xf32, #tpu.memory_space<vmem>>, vector<8x256xf32>,
    %c1_i32_95 = arith.constant 1 : i32
    %91 = tpu.dynamic_rotate %84 by %c1_i32_95 dim 1 : vector<8x256xf32>, i32 -> vector<8x256xf32>
    %c24_96 = arith.constant 24 : index
    %c0_97 = arith.constant 0 : index
    %92 = vector.load %arg8[%c24_96, %c0_97] : memref<72x256xf32, #tpu.memory_space<vmem>>, vector<8x256xf32>
    tpu.vector_store %arg8[%c24_96, %c0_97], %91 {strides = array<i32>} : memref<72x256xf32, #tpu.memory_space<vmem>>, vector<8x256xf32>,
    %c32_98 = arith.constant 32 : index
    %c0_99 = arith.constant 0 : index
    %93 = vector.load %arg8[%c32_98, %c0_99] : memref<72x256xf32, #tpu.memory_space<vmem>>, vector<8x256xf32>
    tpu.vector_store %arg8[%c32_98, %c0_99], %84 {strides = array<i32>} : memref<72x256xf32, #tpu.memory_space<vmem>>, vector<8x256xf32>,
    %c255_i32_100 = arith.constant 255 : i32
    %94 = tpu.dynamic_rotate %84 by %c255_i32_100 dim 1 : vector<8x256xf32>, i32 -> vector<8x256xf32>
    %c40_101 = arith.constant 40 : index
    %c0_102 = arith.constant 0 : index
    %95 = vector.load %arg8[%c40_101, %c0_102] : memref<72x256xf32, #tpu.memory_space<vmem>>, vector<8x256xf32>
    tpu.vector_store %arg8[%c40_101, %c0_102], %94 {strides = array<i32>} : memref<72x256xf32, #tpu.memory_space<vmem>>, vector<8x256xf32>,
    %c241_i32_103 = arith.constant 241 : i32
    %96 = tpu.dynamic_rotate %84 by %c241_i32_103 dim 1 : vector<8x256xf32>, i32 -> vector<8x256xf32>
    %c48_104 = arith.constant 48 : index
    %c0_105 = arith.constant 0 : index
    %97 = vector.load %arg8[%c48_104, %c0_105] : memref<72x256xf32, #tpu.memory_space<vmem>>, vector<8x256xf32>
    tpu.vector_store %arg8[%c48_104, %c0_105], %96 {strides = array<i32>} : memref<72x256xf32, #tpu.memory_space<vmem>>, vector<8x256xf32>,
    %c240_i32_106 = arith.constant 240 : i32
    %98 = tpu.dynamic_rotate %84 by %c240_i32_106 dim 1 : vector<8x256xf32>, i32 -> vector<8x256xf32>
    %c56_107 = arith.constant 56 : index
    %c0_108 = arith.constant 0 : index
    %99 = vector.load %arg8[%c56_107, %c0_108] : memref<72x256xf32, #tpu.memory_space<vmem>>, vector<8x256xf32>
    tpu.vector_store %arg8[%c56_107, %c0_108], %98 {strides = array<i32>} : memref<72x256xf32, #tpu.memory_space<vmem>>, vector<8x256xf32>,
    %c239_i32_109 = arith.constant 239 : i32
    %100 = tpu.dynamic_rotate %84 by %c239_i32_109 dim 1 : vector<8x256xf32>, i32 -> vector<8x256xf32>
    %c64_110 = arith.constant 64 : index
    %c0_111 = arith.constant 0 : index
    %101 = vector.load %arg8[%c64_110, %c0_111] : memref<72x256xf32, #tpu.memory_space<vmem>>, vector<8x256xf32>
    tpu.vector_store %arg8[%c64_110, %c0_111], %100 {strides = array<i32>} : memref<72x256xf32, #tpu.memory_space<vmem>>, vector<8x256xf32>,
    %c0_112 = arith.constant 0 : index
    %c0_113 = arith.constant 0 : index
    %102 = vector.load %arg8[%c0_112, %c0_113] : memref<72x256xf32, #tpu.memory_space<vmem>>, vector<72x256xf32>
    %c0_114 = arith.constant 0 : index
    %c0_115 = arith.constant 0 : index
    %103 = vector.load %arg2[%c0_114, %c0_115] : memref<72x256xf32, #tpu.memory_space<vmem>>, vector<72x256xf32>
    %104 = arith.mulf %102, %103 : vector<72x256xf32>
    %c0_116 = arith.constant 0 : index
    %c0_117 = arith.constant 0 : index
    %105 = vector.load %arg6[%c0_116, %c0_117] : memref<8x72xf32, #tpu.memory_space<vmem>>, vector<8x72xf32>
    %cst_118 = arith.constant dense<0.000000e+00> : vector<8x256xf32>
    %106 = tpu.matmul %105, %104, %cst_118 {dimension_numbers = #tpu.dot_dimension_numbers<[1], [0], [0], [1], [0, 0, 1, 1], [], []>} : vector<8x72xf32>, vector<72x256xf32>, vector<8x256xf32> -> vector<8x256xf32>
    %107 = arith.negf %106 : vector<8x256xf32>
    %108 = math.exp %107 : vector<8x256xf32>
    %cst_119 = arith.constant 1.000000e+00 : f32
    %109 = vector.broadcast %cst_119 : f32 to vector<8x256xf32>
    %110 = arith.addf %109, %108 : vector<8x256xf32>
    %111 = arith.divf %109, %110 : vector<8x256xf32>
    %cst_120 = arith.constant dense<0.000000e+00> : vector<8x8xf32>
    %112 = tpu.matmul %111, %0, %cst_120 {dimension_numbers = #tpu.dot_dimension_numbers<[1], [1], [0], [0], [0, 0, 1, 0], [], []>} : vector<8x256xf32>, vector<8x256xf32>, vector<8x8xf32> -> vector<8x8xf32>
    %cst_121 = arith.constant 3.906250e-03 : f32
    %113 = vector.broadcast %cst_121 : f32 to vector<8x8xf32>
    %114 = arith.mulf %112, %113 : vector<8x8xf32>
    %c0_122 = arith.constant 0 : index
    %c0_123 = arith.constant 0 : index
    %c0_124 = arith.constant 0 : index
    %115 = vector.load %arg7[%c0_122, %c0_123, %c0_124] : memref<1x8x8xf32, #tpu.memory_space<vmem>>, vector<1x8x8xf32>
    %116 = vector.shape_cast %115 : vector<1x8x8xf32> to vector<8x8xf32>
    %117 = vector.shape_cast %114 : vector<8x8xf32> to vector<1x8x8xf32>
    tpu.vector_store %arg7[%c0_122, %c0_123, %c0_124], %117 {strides = array<i32>} : memref<1x8x8xf32, #tpu.memory_space<vmem>>, vector<1x8x8xf32>,
    return
  }
  func.func @transform_0(%arg0: i32) -> (i32, i32) {
    %c0_i32 = arith.constant 0 : i32
    %c0_i32_0 = arith.constant 0 : i32
    return %c0_i32, %arg0 : i32, i32
  }
  func.func @transform_1(%arg0: i32) -> (i32, i32) {
    %c0_i32 = arith.constant 0 : i32
    %c0_i32_0 = arith.constant 0 : i32
    %c0_i32_1 = arith.constant 0 : i32
    return %c0_i32, %c0_i32_0 : i32, i32
  }
  func.func @transform_2(%arg0: i32) -> (i32, i32) {
    %c0_i32 = arith.constant 0 : i32
    %c0_i32_0 = arith.constant 0 : i32
    %c0_i32_1 = arith.constant 0 : i32
    return %c0_i32, %c0_i32_0 : i32, i32
  }
  func.func @transform_3(%arg0: i32) -> (i32, i32) {
    %c0_i32 = arith.constant 0 : i32
    %c0_i32_0 = arith.constant 0 : i32
    %c0_i32_1 = arith.constant 0 : i32
    return %c0_i32, %c0_i32_0 : i32, i32
  }
  func.func @transform_4(%arg0: i32) -> (i32, i32) {
    %c0_i32 = arith.constant 0 : i32
    %c0_i32_0 = arith.constant 0 : i32
    %c0_i32_1 = arith.constant 0 : i32
    return %c0_i32, %c0_i32_0 : i32, i32
  }
  func.func @transform_5(%arg0: i32) -> (i32, i32) {
    %c0_i32 = arith.constant 0 : i32
    %c0_i32_0 = arith.constant 0 : i32
    %c0_i32_1 = arith.constant 0 : i32
    return %c0_i32, %c0_i32_0 : i32, i32
  }
  func.func @transform_6(%arg0: i32) -> (i32, i32, i32) {
    %c0_i32 = arith.constant 0 : i32
    %c0_i32_0 = arith.constant 0 : i32
    %c0_i32_1 = arith.constant 0 : i32
    return %arg0, %c0_i32, %c0_i32_0 : i32, i32, i32
  }
}

</mosaic_0001>

<llo_original>
// kernel: tpu_custom_call.1
$region0: #{tpu_custom_call.1}
  #allocation0 [shape = 'u32[]', space=smem, size = 0x4, offset = 0x4, fixed_abs, tag = 'smem constant byte address 0x4 - core index']
  #allocation1 [shape = 'u32[72,128]{1,0:T(1,128)}', space=vmem, size = 0x9000, scoped, tag = 'internal scratch']
  #allocation2 [shape = 'f32[72,256]{1,0:T(8,128)}', space=vmem, size = 0x12000, scoped, tag = 'scratch operand']
  %s0 = inlined_call_operand.hbm [shape: f32[8,512], index: 0, kind: input, shape index: {}]
  %s1 = inlined_call_operand.hbm [shape: f32[72,256], index: 1, kind: input, shape index: {}]
  %s2 = inlined_call_operand.hbm [shape: f32[8,72], index: 2, kind: input, shape index: {}]
  %s3 = inlined_call_operand.hbm [shape: f32[8,72], index: 3, kind: input, shape index: {}]
  %s4 = inlined_call_operand.hbm [shape: f32[8,72], index: 4, kind: input, shape index: {}]
  %s5 = inlined_call_operand.hbm [shape: f32[8,72], index: 5, kind: input, shape index: {}]
  %s6 = inlined_call_operand.hbm [shape: f32[2,8,8], index: 6, kind: output, shape index: {}]
  %s7 = sld [smem:[#allocation0]]
  $region81: #{tpu_custom_call.1} parent=0
    _
  %s9 = ssub.s32 1, %s7
  %s10 = scalar_select 0, %s9, %s7
  $region1: #{tpu_custom_call.1} parent=0
    #allocation3 [shape = 'u8[16384]{0}', space=vmem, size = 0x4000, scoped, tag = 'input window, operand 0']
    #allocation4 [shape = 's32[2]{0}', space=sflag, size = 0x8, scoped, tag = 'scoped memory for tpu_custom_call.1']
    #allocation5 [shape = 's32[2]{0}', space=sflag, size = 0x8, scoped, tag = 'scoped memory for tpu_custom_call.1']
    #allocation6 [shape = 'u8[73728]{0}', space=vmem, size = 0x12000, scoped, tag = 'input window, operand 1, single buffered']
    #allocation7 [shape = 's32[1]{0}', space=sflag, size = 0x4, scoped, tag = 'scoped memory for tpu_custom_call.1']
    #allocation8 [shape = 'u8[4096]{0}', space=vmem, size = 0x1000, scoped, tag = 'input window, operand 2, single buffered']
    #allocation9 [shape = 'u8[4096]{0}', space=vmem, size = 0x1000, scoped, tag = 'input window, operand 3, single buffered']
    #allocation10 [shape = 's32[1]{0}', space=sflag, size = 0x4, scoped, tag = 'scoped memory for tpu_custom_call.1']
    #allocation11 [shape = 'u8[4096]{0}', space=vmem, size = 0x1000, scoped, tag = 'input window, operand 4, single buffered']
    #allocation12 [shape = 'u8[4096]{0}', space=vmem, size = 0x1000, scoped, tag = 'input window, operand 5, single buffered']
    #allocation13 [shape = 's32[1]{0}', space=sflag, size = 0x4, scoped, tag = 'scoped memory for tpu_custom_call.1']
    #allocation14 [shape = 'u8[8192]{0}', space=vmem, size = 0x2000, scoped, tag = 'output window, operand 0']
    %11 = vsyncpa [#allocation4], 0
    %s12 = scalar_lea.sflag [#allocation4], 1
    %13 = vsyncpa %s12, 0
    %14 = vsyncpa [#allocation7], 0
    %15 = vsyncpa [#allocation10], 0
    %16 = vsyncpa [#allocation13], 0
    %17 = vsyncpa [#allocation5], 0
    %s18 = scalar_lea.sflag [#allocation5], 1
    %19 = vsyncpa %s18, 0
    loop: start=0, step=1, limit=4
    $region2: #{tpu_custom_call.1} parent=1 // loop_pre_header
      _
    $region3: #{tpu_custom_call.1} parent=1 // loop_header
      %s21 = sphi 0, %s25
      %p22 = scmp.ge.s32.totalorder %s21, 4
      %s31 = sphi 0, %s33
      %s34 = sphi 0, %s31
      %s35 = sphi 0, %s34
      %s51 = sphi 0, %s35
      %s55 = sphi 0, %s55
      %s57 = sphi 0, %s55
      %s58 = sphi 0, %s57
      %s72 = sphi 0, %s58
      %s76 = sphi 0, %s76
      %s78 = sphi 0, %s76
      %s79 = sphi 0, %s78
      %s93 = sphi 0, %s79
      %s97 = sphi 0, %s97
      %s99 = sphi 0, %s97
      %s100 = sphi 0, %s99
      %s114 = sphi 0, %s100
      %s118 = sphi 0, %s118
      %s120 = sphi 0, %s118
      %s121 = sphi 0, %s120
      %s135 = sphi 0, %s121
      %s139 = sphi 0, %s139
      %s141 = sphi 0, %s139
      %s142 = sphi 0, %s141
      %s156 = sphi 0, %s142
      %s162 = sphi 0, %s164
      %s165 = sphi 0, %s162
      %s166 = sphi 0, %s165
      %s182 = sphi 0, %s166
    $region4: #{tpu_custom_call.1} parent=1 // loop_header_branch
      %24 = sbr.rel (%p22) target = $region8
    $region5: #{tpu_custom_call.1} parent=1 // loop_body
      %s26 = ssub.s32 %s21, 1
      %s27 = ssub.s32 %s21, 2
      %s28 = sadd.s32 %s21, 1
      %s29 = ssub.s32 %s21, %s28
      %p30 = scmp.eq.s32.totalorder %s29, 0
      %s32 = sadd.s32 %s31, 1
      %s33 = scalar_select %p30, %s31, %s32
      %p36 = pneg %p30
      %p37 = scmp.eq.s32.totalorder %s21, 1
      %p38 = por %p36, %p37
      %p39 = scmp.ne.s32.totalorder %s31, %s34
      %p40 = scmp.eq.s32.totalorder %s21, 0
      %p41 = por %p39, %p40
      %p42 = scmp.ne.s32.totalorder %s31, %s34
      %p43 = scmp.eq.s32.totalorder %s26, 1
      %p44 = por %p42, %p43
      %p45 = scmp.ne.s32.totalorder %s34, %s35
      %p46 = scmp.eq.s32.totalorder %s26, 0
      %p47 = por %p45, %p46
      %p48 = scmp.ne.s32.totalorder %s34, %s35
      %p49 = scmp.eq.s32.totalorder %s27, 1
      %p50 = por %p48, %p49
      %p52 = scmp.ne.s32.totalorder %s35, %s51
      %p53 = scmp.eq.s32.totalorder %s27, 0
      %p54 = por %p52, %p53
      %s56 = sadd.s32 %s55, 1
      %p59 = scmp.eq.s32.totalorder %s21, 1
      %p60 = scmp.ne.s32.totalorder %s55, %s57
      %p61 = scmp.eq.s32.totalorder %s21, 0
      %p62 = por %p60, %p61
      %p63 = scmp.ne.s32.totalorder %s55, %s57
      %p64 = scmp.eq.s32.totalorder %s26, 1
      %p65 = por %p63, %p64
      %p66 = scmp.ne.s32.totalorder %s57, %s58
      %p67 = scmp.eq.s32.totalorder %s26, 0
      %p68 = por %p66, %p67
      %p69 = scmp.ne.s32.totalorder %s57, %s58
      %p70 = scmp.eq.s32.totalorder %s27, 1
      %p71 = por %p69, %p70
      %p73 = scmp.ne.s32.totalorder %s58, %s72
      %p74 = scmp.eq.s32.totalorder %s27, 0
      %p75 = por %p73, %p74
      %s77 = sadd.s32 %s76, 1
      %p80 = scmp.eq.s32.totalorder %s21, 1
      %p81 = scmp.ne.s32.totalorder %s76, %s78
      %p82 = scmp.eq.s32.totalorder %s21, 0
      %p83 = por %p81, %p82
      %p84 = scmp.ne.s32.totalorder %s76, %s78
      %p85 = scmp.eq.s32.totalorder %s26, 1
      %p86 = por %p84, %p85
      %p87 = scmp.ne.s32.totalorder %s78, %s79
      %p88 = scmp.eq.s32.totalorder %s26, 0
      %p89 = por %p87, %p88
      %p90 = scmp.ne.s32.totalorder %s78, %s79
      %p91 = scmp.eq.s32.totalorder %s27, 1
      %p92 = por %p90, %p91
      %p94 = scmp.ne.s32.totalorder %s79, %s93
      %p95 = scmp.eq.s32.totalorder %s27, 0
      %p96 = por %p94, %p95
      %s98 = sadd.s32 %s97, 1
      %p101 = scmp.eq.s32.totalorder %s21, 1
      %p102 = scmp.ne.s32.totalorder %s97, %s99
      %p103 = scmp.eq.s32.totalorder %s21, 0
      %p104 = por %p102, %p103
      %p105 = scmp.ne.s32.totalorder %s97, %s99
      %p106 = scmp.eq.s32.totalorder %s26, 1
      %p107 = por %p105, %p106
      %p108 = scmp.ne.s32.totalorder %s99, %s100
      %p109 = scmp.eq.s32.totalorder %s26, 0
      %p110 = por %p108, %p109
      %p111 = scmp.ne.s32.totalorder %s99, %s100
      %p112 = scmp.eq.s32.totalorder %s27, 1
      %p113 = por %p111, %p112
      %p115 = scmp.ne.s32.totalorder %s100, %s114
      %p116 = scmp.eq.s32.totalorder %s27, 0
      %p117 = por %p115, %p116
      %s119 = sadd.s32 %s118, 1
      %p122 = scmp.eq.s32.totalorder %s21, 1
      %p123 = scmp.ne.s32.totalorder %s118, %s120
      %p124 = scmp.eq.s32.totalorder %s21, 0
      %p125 = por %p123, %p124
      %p126 = scmp.ne.s32.totalorder %s118, %s120
      %p127 = scmp.eq.s32.totalorder %s26, 1
      %p128 = por %p126, %p127
      %p129 = scmp.ne.s32.totalorder %s120, %s121
      %p130 = scmp.eq.s32.totalorder %s26, 0
      %p131 = por %p129, %p130
      %p132 = scmp.ne.s32.totalorder %s120, %s121
      %p133 = scmp.eq.s32.totalorder %s27, 1
      %p134 = por %p132, %p133
      %p136 = scmp.ne.s32.totalorder %s121, %s135
      %p137 = scmp.eq.s32.totalorder %s27, 0
      %p138 = por %p136, %p137
      %s140 = sadd.s32 %s139, 1
      %p143 = scmp.eq.s32.totalorder %s21, 1
      %p144 = scmp.ne.s32.totalorder %s139, %s141
      %p145 = scmp.eq.s32.totalorder %s21, 0
      %p146 = por %p144, %p145
      %p147 = scmp.ne.s32.totalorder %s139, %s141
      %p148 = scmp.eq.s32.totalorder %s26, 1
      %p149 = por %p147, %p148
      %p150 = scmp.ne.s32.totalorder %s141, %s142
      %p151 = scmp.eq.s32.totalorder %s26, 0
      %p152 = por %p150, %p151
      %p153 = scmp.ne.s32.totalorder %s141, %s142
      %p154 = scmp.eq.s32.totalorder %s27, 1
      %p155 = por %p153, %p154
      %p157 = scmp.ne.s32.totalorder %s142, %s156
      %p158 = scmp.eq.s32.totalorder %s27, 0
      %p159 = por %p157, %p158
      %s160 = ssub.s32 %s21, %s28
      %p161 = scmp.eq.s32.totalorder %s160, 0
      %s163 = sadd.s32 %s162, 1
      %s164 = scalar_select %p161, %s162, %s163
      %p167 = pneg %p161
      %p168 = scmp.eq.s32.totalorder %s21, 1
      %p169 = por %p167, %p168
      %p170 = scmp.ne.s32.totalorder %s162, %s165
      %p171 = scmp.eq.s32.totalorder %s21, 0
      %p172 = por %p170, %p171
      %p173 = scmp.ne.s32.totalorder %s162, %s165
      %p174 = scmp.eq.s32.totalorder %s26, 1
      %p175 = por %p173, %p174
      %p176 = scmp.ne.s32.totalorder %s165, %s166
      %p177 = scmp.eq.s32.totalorder %s26, 0
      %p178 = por %p176, %p177
      %p179 = scmp.ne.s32.totalorder %s165, %s166
      %p180 = scmp.eq.s32.totalorder %s27, 1
      %p181 = por %p179, %p180
      %p183 = scmp.ne.s32.totalorder %s166, %s182
      %p184 = scmp.eq.s32.totalorder %s27, 0
      %p185 = por %p183, %p184
      %p186 = scmp.le.s32.totalorder 1, %s21
      %p187 = scmp.lt.s32.totalorder %s21, 3
      %p188 = pnand %p186, %p187
      %p189 = pneg %p188
      // Predicated region
      $region9: #{tpu_custom_call.1} parent=5 // pred_check
        _
      $region10: #{tpu_custom_call.1} parent=5 // pred_check_branch
        %191 = sbr.rel (%p188) target = $region12
      $region11: #{tpu_custom_call.1} parent=5 // pred_region
        %s192 = ssub.s32 %s21, 1
        // Predicated region
        $region13: #{tpu_custom_call.1} parent=11 // pred_check
          %p193 = pneg %p68
        $region14: #{tpu_custom_call.1} parent=11 // pred_check_branch
          %195 = sbr.rel (%p193) target = $region16
        $region15: #{tpu_custom_call.1} parent=11 // pred_region
          %197 = vsyncadd [#allocation7], 0
          %s198 = sshll.u32 %s1, 4
          %s199 = int_to_ptr.hbm [resolvable:$true] %s198
          %s200 = sshll.u32 [#allocation6], 4
          %s201 = int_to_ptr.vmem [resolvable:$true] %s200
          %206 = dma.hbm_to_vmem [thread:$0]  %s199, 2304, %s201, [#allocation7], 256, 256, 16
        $region16: #{tpu_custom_call.1} parent=11 // pred_fallthru
          _
        // Predicated region
        $region17: #{tpu_custom_call.1} parent=11 // pred_check
          %p207 = pneg %p89
        $region18: #{tpu_custom_call.1} parent=11 // pred_check_branch
          %209 = sbr.rel (%p207) target = $region20
        $region19: #{tpu_custom_call.1} parent=11 // pred_region
          %211 = vsyncadd [#allocation7], 0
          %s213 = sshll.u32 %s2, 4
          %s214 = int_to_ptr.hbm [resolvable:$true] %s213
          %s215 = sshll.u32 [#allocation8], 4
          %s216 = int_to_ptr.vmem [resolvable:$true] %s215
          %218 = dma.hbm_to_vmem [thread:$0]  %s214, 128, %s216, [#allocation7]
        $region20: #{tpu_custom_call.1} parent=11 // pred_fallthru
          _
        // Predicated region
        $region21: #{tpu_custom_call.1} parent=11 // pred_check
          %p219 = pneg %p110
        $region22: #{tpu_custom_call.1} parent=11 // pred_check_branch
          %221 = sbr.rel (%p219) target = $region24
        $region23: #{tpu_custom_call.1} parent=11 // pred_region
          %223 = vsyncadd [#allocation10], 0
          %s225 = sshll.u32 %s3, 4
          %s226 = int_to_ptr.hbm [resolvable:$true] %s225
          %s227 = sshll.u32 [#allocation9], 4
          %s228 = int_to_ptr.vmem [resolvable:$true] %s227
          %230 = dma.hbm_to_vmem [thread:$0]  %s226, 128, %s228, [#allocation10]
        $region24: #{tpu_custom_call.1} parent=11 // pred_fallthru
          _
        // Predicated region
        $region25: #{tpu_custom_call.1} parent=11 // pred_check
          %p231 = pneg %p131
        $region26: #{tpu_custom_call.1} parent=11 // pred_check_branch
          %233 = sbr.rel (%p231) target = $region28
        $region27: #{tpu_custom_call.1} parent=11 // pred_region
          %235 = vsyncadd [#allocation10], 0
          %s237 = sshll.u32 %s4, 4
          %s238 = int_to_ptr.hbm [resolvable:$true] %s237
          %s239 = sshll.u32 [#allocation11], 4
          %s240 = int_to_ptr.vmem [resolvable:$true] %s239
          %242 = dma.hbm_to_vmem [thread:$0]  %s238, 128, %s240, [#allocation10]
        $region28: #{tpu_custom_call.1} parent=11 // pred_fallthru
          _
        // Predicated region
        $region29: #{tpu_custom_call.1} parent=11 // pred_check
          %p243 = pneg %p152
        $region30: #{tpu_custom_call.1} parent=11 // pred_check_branch
          %245 = sbr.rel (%p243) target = $region32
        $region31: #{tpu_custom_call.1} parent=11 // pred_region
          %247 = vsyncadd [#allocation13], 0
          %s249 = sshll.u32 %s5, 4
          %s250 = int_to_ptr.hbm [resolvable:$true] %s249
          %s251 = sshll.u32 [#allocation12], 4
          %s252 = int_to_ptr.vmem [resolvable:$true] %s251
          %254 = dma.hbm_to_vmem [thread:$0]  %s250, 128, %s252, [#allocation13]
        $region32: #{tpu_custom_call.1} parent=11 // pred_fallthru
          _
      $region12: #{tpu_custom_call.1} parent=5 // pred_fallthru
        _
      %p255 = scmp.lt.s32.totalorder %s21, 2
      // Predicated region
      $region33: #{tpu_custom_call.1} parent=5 // pred_check
        %p256 = pneg %p255
      $region34: #{tpu_custom_call.1} parent=5 // pred_check_branch
        %258 = sbr.rel (%p256) target = $region36
      $region35: #{tpu_custom_call.1} parent=5 // pred_region
        // Predicated region
        $region37: #{tpu_custom_call.1} parent=35 // pred_check
          %p259 = pneg %p41
        $region38: #{tpu_custom_call.1} parent=35 // pred_check_branch
          %261 = sbr.rel (%p259) target = $region40
        $region39: #{tpu_custom_call.1} parent=35 // pred_region
          %s262 = sand.u32 %s31, 1
          %s263 = scalar_lea.sflag [#allocation4], %s262
          %s264 = sand.u32 %s31, 1
          %s265 = smul.addr %s264, 16
          %s266 = scalar_lea.vmem [#allocation3], %s265
          %s267 = smul.u32 2, %s21
          %269 = vsyncadd %s263, 0
          %s270 = smul.addr %s267, 8
          %s271 = scalar_lea.hbm %s0, %s270
          %s273 = sshll.u32 %s271, 4
          %s274 = int_to_ptr.hbm [resolvable:$true] %s273
          %s275 = sshll.u32 %s266, 4
          %s276 = int_to_ptr.vmem [resolvable:$true] %s275
          %278 = dma.hbm_to_vmem [thread:$0]  %s274, 256, %s276, %s263
        $region40: #{tpu_custom_call.1} parent=35 // pred_fallthru
          _
      $region36: #{tpu_custom_call.1} parent=5 // pred_fallthru
        _
      %p279 = scmp.le.s32.totalorder 1, %s21
      %p280 = scmp.lt.s32.totalorder %s21, 3
      %p281 = pnand %p279, %p280
      %p282 = pneg %p281
      // Predicated region
      $region41: #{tpu_custom_call.1} parent=5 // pred_check
        _
      $region42: #{tpu_custom_call.1} parent=5 // pred_check_branch
        %284 = sbr.rel (%p281) target = $region44
      $region43: #{tpu_custom_call.1} parent=5 // pred_region
        %s285 = ssub.s32 %s21, 1
        %s286 = sand.u32 %s34, 1
        %s287 = scalar_lea.sflag [#allocation4], %s286
        %s288 = sand.u32 %s34, 1
        %s289 = smul.addr %s288, 16
        %s290 = scalar_lea.vmem [#allocation3], %s289
        // Predicated region
        $region45: #{tpu_custom_call.1} parent=43 // pred_check
          %p291 = pneg %p47
        $region46: #{tpu_custom_call.1} parent=43 // pred_check_branch
          %293 = sbr.rel (%p291) target = $region48
        $region47: #{tpu_custom_call.1} parent=43 // pred_region
          %295 = dma.done %s287, 256
        $region48: #{tpu_custom_call.1} parent=43 // pred_fallthru
          _
        // Predicated region
        $region49: #{tpu_custom_call.1} parent=43 // pred_check
          %p296 = pneg %p68
        $region50: #{tpu_custom_call.1} parent=43 // pred_check_branch
          %298 = sbr.rel (%p296) target = $region52
        $region51: #{tpu_custom_call.1} parent=43 // pred_region
          %300 = dma.done [#allocation7], 2304
        $region52: #{tpu_custom_call.1} parent=43 // pred_fallthru
          _
        // Predicated region
        $region53: #{tpu_custom_call.1} parent=43 // pred_check
          %p301 = pneg %p89
        $region54: #{tpu_custom_call.1} parent=43 // pred_check_branch
          %303 = sbr.rel (%p301) target = $region56
        $region55: #{tpu_custom_call.1} parent=43 // pred_region
          %305 = dma.done [#allocation7], 128
        $region56: #{tpu_custom_call.1} parent=43 // pred_fallthru
          _
        // Predicated region
        $region57: #{tpu_custom_call.1} parent=43 // pred_check
          %p306 = pneg %p110
        $region58: #{tpu_custom_call.1} parent=43 // pred_check_branch
          %308 = sbr.rel (%p306) target = $region60
        $region59: #{tpu_custom_call.1} parent=43 // pred_region
          %310 = dma.done [#allocation10], 128
        $region60: #{tpu_custom_call.1} parent=43 // pred_fallthru
          _
        // Predicated region
        $region61: #{tpu_custom_call.1} parent=43 // pred_check
          %p311 = pneg %p131
        $region62: #{tpu_custom_call.1} parent=43 // pred_check_branch
          %313 = sbr.rel (%p311) target = $region64
        $region63: #{tpu_custom_call.1} parent=43 // pred_region
          %315 = dma.done [#allocation10], 128
        $region64: #{tpu_custom_call.1} parent=43 // pred_fallthru
          _
        // Predicated region
        $region65: #{tpu_custom_call.1} parent=43 // pred_check
          %p316 = pneg %p152
        $region66: #{tpu_custom_call.1} parent=43 // pred_check_branch
          %318 = sbr.rel (%p316) target = $region68
        $region67: #{tpu_custom_call.1} parent=43 // pred_region
          %320 = dma.done [#allocation13], 128
        $region68: #{tpu_custom_call.1} parent=43 // pred_fallthru
          _
        %s321 = sand.u32 %s34, 1
        %s322 = scalar_lea.sflag [#allocation4], %s321
        %s323 = sand.u32 %s34, 1
        %s324 = smul.addr %s323, 16
        %s325 = scalar_lea.vmem [#allocation3], %s324
        %p326 = pneg %p47
        %p327 = pneg %p44
        %p328 = pneg %p68
        %p329 = pneg %p65
        %p330 = pneg %p89
        %p331 = pneg %p86
        %p332 = pneg %p110
        %p333 = pneg %p107
        %p334 = pneg %p131
        %p335 = pneg %p128
        %p336 = pneg %p152
        %p337 = pneg %p149
        %p338 = pneg %p178
        %p339 = pneg %p175
        %s340 = sand.u32 %s165, 1
        %s341 = scalar_lea.sflag [#allocation5], %s340
        %s342 = sand.u32 %s165, 1
        %s343 = smul.addr %s342, 8
        %s344 = scalar_lea.vmem [#allocation14], %s343
        %s345 = smul.u32 2, %s26
        %v346 = vld [vmem:[%s290] sm:$0xff]
        %v347 = vld [vmem:[%s290 + $0x8] sm:$0xff]
        %348 = vrot.lane.b32.xlu0 %v346, 17
        %v349 = vpop.permute.xlu0 %348
        %350 = vrot.lane.b32.xlu0 %v347, 17
        %v351 = vpop.permute.xlu0 %350
        %v352 = vlaneseq
        %v353 = vand.u32 %v352, 127
        %vm354 = vcmp.lt.s32.totalorder %v353, 17
        %v355 = vsel %vm354, %v349, %v351
        %v356 = vsel %vm354, %v351, %v349
        %357 = vst [vmem:[#allocation2] sm:$0xff] %v356
        %358 = vst [vmem:[#allocation2 + $0x8] sm:$0xff] %v355
        %359 = vrot.lane.b32.xlu0 %v346, 16
        %v360 = vpop.permute.xlu0 %359
        %361 = vrot.lane.b32.xlu0 %v347, 16
        %v362 = vpop.permute.xlu0 %361
        %vm363 = vcmp.lt.s32.totalorder %v353, 16
        %v364 = vsel %vm363, %v360, %v362
        %v365 = vsel %vm363, %v362, %v360
        %366 = vst [vmem:[#allocation2 + $0x10] sm:$0xff] %v365
        %367 = vst [vmem:[#allocation2 + $0x18] sm:$0xff] %v364
        %368 = vrot.lane.b32.xlu0 %v346, 15
        %v369 = vpop.permute.xlu0 %368
        %370 = vrot.lane.b32.xlu0 %v347, 15
        %v371 = vpop.permute.xlu0 %370
        %vm372 = vcmp.lt.s32.totalorder %v353, 15
        %v373 = vsel %vm372, %v369, %v371
        %v374 = vsel %vm372, %v371, %v369
        %375 = vst [vmem:[#allocation2 + $0x20] sm:$0xff] %v374
        %376 = vst [vmem:[#allocation2 + $0x28] sm:$0xff] %v373
        %377 = vrot.lane.b32.xlu0 %v346, 1
        %v378 = vpop.permute.xlu0 %377
        %379 = vrot.lane.b32.xlu0 %v347, 1
        %v380 = vpop.permute.xlu0 %379
        %vm381 = vcmp.lt.s32.totalorder %v353, 1
        %v382 = vsel %vm381, %v378, %v380
        %v383 = vsel %vm381, %v380, %v378
        %384 = vst [vmem:[#allocation2 + $0x30] sm:$0xff] %v383
        %385 = vst [vmem:[#allocation2 + $0x38] sm:$0xff] %v382
        %386 = vst [vmem:[#allocation2 + $0x40] sm:$0xff] %v346
        %387 = vst [vmem:[#allocation2 + $0x48] sm:$0xff] %v347
        %388 = vrot.lane.b32.xlu0 %v346, 127
        %v389 = vpop.permute.xlu0 %388
        %390 = vrot.lane.b32.xlu0 %v347, 127
        %v391 = vpop.permute.xlu0 %390
        %vm392 = vcmp.lt.s32.totalorder %v353, 127
        %v393 = vsel %vm392, %v389, %v391
        %v394 = vsel %vm392, %v391, %v389
        %395 = vst [vmem:[#allocation2 + $0x50] sm:$0xff] %v393
        %396 = vst [vmem:[#allocation2 + $0x58] sm:$0xff] %v394
        %397 = vrot.lane.b32.xlu0 %v346, 113
        %v398 = vpop.permute.xlu0 %397
        %399 = vrot.lane.b32.xlu0 %v347, 113
        %v400 = vpop.permute.xlu0 %399
        %vm401 = vcmp.lt.s32.totalorder %v353, 113
        %v402 = vsel %vm401, %v398, %v400
        %v403 = vsel %vm401, %v400, %v398
        %404 = vst [vmem:[#allocation2 + $0x60] sm:$0xff] %v402
        %405 = vst [vmem:[#allocation2 + $0x68] sm:$0xff] %v403
        %406 = vrot.lane.b32.xlu0 %v346, 112
        %v407 = vpop.permute.xlu0 %406
        %408 = vrot.lane.b32.xlu0 %v347, 112
        %v409 = vpop.permute.xlu0 %408
        %vm410 = vcmp.lt.s32.totalorder %v353, 112
        %v411 = vsel %vm410, %v407, %v409
        %v412 = vsel %vm410, %v409, %v407
        %413 = vst [vmem:[#allocation2 + $0x70] sm:$0xff] %v411
        %414 = vst [vmem:[#allocation2 + $0x78] sm:$0xff] %v412
        %415 = vrot.lane.b32.xlu0 %v346, 111
        %v416 = vpop.permute.xlu0 %415
        %417 = vrot.lane.b32.xlu0 %v347, 111
        %v418 = vpop.permute.xlu0 %417
        %vm419 = vcmp.lt.s32.totalorder %v353, 111
        %v420 = vsel %vm419, %v416, %v418
        %v421 = vsel %vm419, %v418, %v416
        %422 = vst [vmem:[#allocation2 + $0x80] sm:$0xff] %v420
        %423 = vst [vmem:[#allocation2 + $0x88] sm:$0xff] %v421
        %v424 = vld [vmem:[#allocation2] sm:$0xff]
        %v425 = vld [vmem:[#allocation2 + $0x8] sm:$0xff]
        %v426 = vld [vmem:[#allocation2 + $0x10] sm:$0xff]
        %v427 = vld [vmem:[#allocation2 + $0x18] sm:$0xff]
        %v428 = vld [vmem:[#allocation2 + $0x20] sm:$0xff]
        %v429 = vld [vmem:[#allocation2 + $0x28] sm:$0xff]
        %v430 = vld [vmem:[#allocation2 + $0x30] sm:$0xff]
        %v431 = vld [vmem:[#allocation2 + $0x38] sm:$0xff]
        %v432 = vld [vmem:[#allocation2 + $0x40] sm:$0xff]
        %v433 = vld [vmem:[#allocation2 + $0x48] sm:$0xff]
        %v434 = vld [vmem:[#allocation2 + $0x50] sm:$0xff]
        %v435 = vld [vmem:[#allocation2 + $0x58] sm:$0xff]
        %v436 = vld [vmem:[#allocation2 + $0x60] sm:$0xff]
        %v437 = vld [vmem:[#allocation2 + $0x68] sm:$0xff]
        %v438 = vld [vmem:[#allocation2 + $0x70] sm:$0xff]
        %v439 = vld [vmem:[#allocation2 + $0x78] sm:$0xff]
        %v440 = vld [vmem:[#allocation2 + $0x80] sm:$0xff]
        %v441 = vld [vmem:[#allocation2 + $0x88] sm:$0xff]
        %v442 = vld [vmem:[#allocation6] sm:$0xff]
        %v443 = vld [vmem:[#allocation6 + $0x8] sm:$0xff]
        %v444 = vld [vmem:[#allocation6 + $0x10] sm:$0xff]
        %v445 = vld [vmem:[#allocation6 + $0x18] sm:$0xff]
        %v446 = vld [vmem:[#allocation6 + $0x20] sm:$0xff]
        %v447 = vld [vmem:[#allocation6 + $0x28] sm:$0xff]
        %v448 = vld [vmem:[#allocation6 + $0x30] sm:$0xff]
        %v449 = vld [vmem:[#allocation6 + $0x38] sm:$0xff]
        %v450 = vld [vmem:[#allocation6 + $0x40] sm:$0xff]
        %v451 = vld [vmem:[#allocation6 + $0x48] sm:$0xff]
        %v452 = vld [vmem:[#allocation6 + $0x50] sm:$0xff]
        %v453 = vld [vmem:[#allocation6 + $0x58] sm:$0xff]
        %v454 = vld [vmem:[#allocation6 + $0x60] sm:$0xff]
        %v455 = vld [vmem:[#allocation6 + $0x68] sm:$0xff]
        %v456 = vld [vmem:[#allocation6 + $0x70] sm:$0xff]
        %v457 = vld [vmem:[#allocation6 + $0x78] sm:$0xff]
        %v458 = vld [vmem:[#allocation6 + $0x80] sm:$0xff]
        %v459 = vld [vmem:[#allocation6 + $0x88] sm:$0xff]
        %v460 = vmul.f32 %v424, %v442
        %v461 = vmul.f32 %v425, %v443
        %v462 = vmul.f32 %v426, %v444
        %v463 = vmul.f32 %v427, %v445
        %v464 = vmul.f32 %v428, %v446
        %v465 = vmul.f32 %v429, %v447
        %v466 = vmul.f32 %v430, %v448
        %v467 = vmul.f32 %v431, %v449
        %v468 = vmul.f32 %v432, %v450
        %v469 = vmul.f32 %v433, %v451
        %v470 = vmul.f32 %v434, %v452
        %v471 = vmul.f32 %v435, %v453
        %v472 = vmul.f32 %v436, %v454
        %v473 = vmul.f32 %v437, %v455
        %v474 = vmul.f32 %v438, %v456
        %v475 = vmul.f32 %v439, %v457
        %v476 = vmul.f32 %v440, %v458
        %v477 = vmul.f32 %v441, %v459
        %v478 = vld [vmem:[#allocation8] sm:$0xff]
        %vm479 = vcmask 588800
        %v481 = vsel %vm479, %v478, 0
        %483 = vmatpush.msra.mxu0 0.0
        %484 = vmatpush.msra.mxu0 0.0
        %485 = vmatpush.msra.mxu0 0.0
        %486 = vmatpush.msra.mxu0 0.0
        %487 = vmatpush.msra.mxu0 0.0
        %488 = vmatpush.msra.mxu0 0.0
        %489 = vmatpush.msra.mxu0 0.0
        %490 = vmatpush.msra.mxu0 %v476
        %491 = vmatpush.msra.mxu0 %v474
        %492 = vmatpush.msra.mxu0 %v472
        %493 = vmatpush.msra.mxu0 %v470
        %494 = vmatpush.msra.mxu0 %v468
        %495 = vmatpush.msra.mxu0 %v466
        %496 = vmatpush.msra.mxu0 %v464
        %497 = vmatpush.msra.mxu0 %v462
        %498 = vmatpush.msra.mxu0 %v460
        %499 = vmatmul.f32.gmra.mxu0 %v481
        %v500 = vpop.f32.mrf.mxu0
        %v501 = vadd.f32 0.0, %v500
        %502 = vdwg.mxu0
        %503 = vmatpush.msra.mxu0 0.0
        %504 = vmatpush.msra.mxu0 0.0
        %505 = vmatpush.msra.mxu0 0.0
        %506 = vmatpush.msra.mxu0 0.0
        %507 = vmatpush.msra.mxu0 0.0
        %508 = vmatpush.msra.mxu0 0.0
        %509 = vmatpush.msra.mxu0 0.0
        %510 = vmatpush.msra.mxu0 %v477
        %511 = vmatpush.msra.mxu0 %v475
        %512 = vmatpush.msra.mxu0 %v473
        %513 = vmatpush.msra.mxu0 %v471
        %514 = vmatpush.msra.mxu0 %v469
        %515 = vmatpush.msra.mxu0 %v467
        %516 = vmatpush.msra.mxu0 %v465
        %517 = vmatpush.msra.mxu0 %v463
        %518 = vmatpush.msra.mxu0 %v461
        %519 = vmatmul.f32.gmra.mxu0 %v481
        %v520 = vpop.f32.mrf.mxu0
        %v521 = vadd.f32 0.0, %v520
        %522 = vdwg.mxu0
        %v523 = vxor.u32 %v501, 2147483648
        %v524 = vxor.u32 %v521, 2147483648
        %v525 = vmul.f32 %v523, 1.442695
        %v526 = vpow.pop %v525
        %v527 = vmul.f32 %v524, 1.442695
        %v528 = vpow.pop %v527
        %v529 = vadd.f32 %v526, 1.0
        %v530 = vadd.f32 %v528, 1.0
        %v531 = vrcp.pop %v529
        %v532 = vmul.f32 %v529, %v531
        %v533 = vsub.f32 1.0, %v532
        %v534 = vmul.f32 %v531, %v533
        %v535 = vadd.f32 %v531, %v534
        %vm536 = vweird.f32 %v529
        %vm537 = vweird.f32 %v531
        %vm538 = vmor %vm536, %vm537
        %v539 = vsel %vm538, %v531, %v535
        %v540 = vand.u32 2147483647, %v529
        %vm541 = vcmp.eq.f32.partialorder %v540, 8.507059e+37
        %v542 = vand.u32 %v529, 2147483648
        %v543 = vor.u32 1.1754944e-38, %v542
        %v544 = vsel %vm541, %v543, %v539
        %v545 = vmul.f32 1.0, %v544
        %v546 = vrcp.pop %v530
        %v547 = vmul.f32 %v530, %v546
        %v548 = vsub.f32 1.0, %v547
        %v549 = vmul.f32 %v546, %v548
        %v550 = vadd.f32 %v546, %v549
        %vm551 = vweird.f32 %v530
        %vm552 = vweird.f32 %v546
        %vm553 = vmor %vm551, %vm552
        %v554 = vsel %vm553, %v546, %v550
        %v555 = vand.u32 2147483647, %v530
        %vm556 = vcmp.eq.f32.partialorder %v555, 8.507059e+37
        %v557 = vand.u32 %v530, 2147483648
        %v558 = vor.u32 1.1754944e-38, %v557
        %v559 = vsel %vm556, %v558, %v554
        %v560 = vmul.f32 1.0, %v559
        %v561 = vmul.f32 %v501, %v545
        %v562 = vmul.f32 %v521, %v560
        %563 = vrot.lane.b32.xlu0 %v561, 17
        %v564 = vpop.permute.xlu0 %563
        %565 = vrot.lane.b32.xlu0 %v562, 17
        %v566 = vpop.permute.xlu0 %565
        %v567 = vsel %vm354, %v564, %v566
        %v568 = vsel %vm354, %v566, %v564
        %569 = vst [vmem:[#allocation2] sm:$0xff] %v568
        %570 = vst [vmem:[#allocation2 + $0x8] sm:$0xff] %v567
        %571 = vrot.lane.b32.xlu0 %v561, 16
        %v572 = vpop.permute.xlu0 %571
        %573 = vrot.lane.b32.xlu0 %v562, 16
        %v574 = vpop.permute.xlu0 %573
        %v575 = vsel %vm363, %v572, %v574
        %v576 = vsel %vm363, %v574, %v572
        %577 = vst [vmem:[#allocation2 + $0x10] sm:$0xff] %v576
        %578 = vst [vmem:[#allocation2 + $0x18] sm:$0xff] %v575
        %579 = vrot.lane.b32.xlu0 %v561, 15
        %v580 = vpop.permute.xlu0 %579
        %581 = vrot.lane.b32.xlu0 %v562, 15
        %v582 = vpop.permute.xlu0 %581
        %v583 = vsel %vm372, %v580, %v582
        %v584 = vsel %vm372, %v582, %v580
        %585 = vst [vmem:[#allocation2 + $0x20] sm:$0xff] %v584
        %586 = vst [vmem:[#allocation2 + $0x28] sm:$0xff] %v583
        %587 = vrot.lane.b32.xlu0 %v561, 1
        %v588 = vpop.permute.xlu0 %587
        %589 = vrot.lane.b32.xlu0 %v562, 1
        %v590 = vpop.permute.xlu0 %589
        %v591 = vsel %vm381, %v588, %v590
        %v592 = vsel %vm381, %v590, %v588
        %593 = vst [vmem:[#allocation2 + $0x30] sm:$0xff] %v592
        %594 = vst [vmem:[#allocation2 + $0x38] sm:$0xff] %v591
        %595 = vst [vmem:[#allocation2 + $0x40] sm:$0xff] %v561
        %596 = vst [vmem:[#allocation2 + $0x48] sm:$0xff] %v562
        %597 = vrot.lane.b32.xlu0 %v561, 127
        %v598 = vpop.permute.xlu0 %597
        %599 = vrot.lane.b32.xlu0 %v562, 127
        %v600 = vpop.permute.xlu0 %599
        %v601 = vsel %vm392, %v598, %v600
        %v602 = vsel %vm392, %v600, %v598
        %603 = vst [vmem:[#allocation2 + $0x50] sm:$0xff] %v601
        %604 = vst [vmem:[#allocation2 + $0x58] sm:$0xff] %v602
        %605 = vrot.lane.b32.xlu0 %v561, 113
        %v606 = vpop.permute.xlu0 %605
        %607 = vrot.lane.b32.xlu0 %v562, 113
        %v608 = vpop.permute.xlu0 %607
        %v609 = vsel %vm401, %v606, %v608
        %v610 = vsel %vm401, %v608, %v606
        %611 = vst [vmem:[#allocation2 + $0x60] sm:$0xff] %v609
        %612 = vst [vmem:[#allocation2 + $0x68] sm:$0xff] %v610
        %613 = vrot.lane.b32.xlu0 %v561, 112
        %v614 = vpop.permute.xlu0 %613
        %615 = vrot.lane.b32.xlu0 %v562, 112
        %v616 = vpop.permute.xlu0 %615
        %v617 = vsel %vm410, %v614, %v616
        %v618 = vsel %vm410, %v616, %v614
        %619 = vst [vmem:[#allocation2 + $0x70] sm:$0xff] %v617
        %620 = vst [vmem:[#allocation2 + $0x78] sm:$0xff] %v618
        %621 = vrot.lane.b32.xlu0 %v561, 111
        %v622 = vpop.permute.xlu0 %621
        %623 = vrot.lane.b32.xlu0 %v562, 111
        %v624 = vpop.permute.xlu0 %623
        %v625 = vsel %vm419, %v622, %v624
        %v626 = vsel %vm419, %v624, %v622
        %627 = vst [vmem:[#allocation2 + $0x80] sm:$0xff] %v625
        %628 = vst [vmem:[#allocation2 + $0x88] sm:$0xff] %v626
        %v629 = vld [vmem:[#allocation2] sm:$0xff]
        %v630 = vld [vmem:[#allocation2 + $0x8] sm:$0xff]
        %v631 = vld [vmem:[#allocation2 + $0x10] sm:$0xff]
        %v632 = vld [vmem:[#allocation2 + $0x18] sm:$0xff]
        %v633 = vld [vmem:[#allocation2 + $0x20] sm:$0xff]
        %v634 = vld [vmem:[#allocation2 + $0x28] sm:$0xff]
        %v635 = vld [vmem:[#allocation2 + $0x30] sm:$0xff]
        %v636 = vld [vmem:[#allocation2 + $0x38] sm:$0xff]
        %v637 = vld [vmem:[#allocation2 + $0x40] sm:$0xff]
        %v638 = vld [vmem:[#allocation2 + $0x48] sm:$0xff]
        %v639 = vld [vmem:[#allocation2 + $0x50] sm:$0xff]
        %v640 = vld [vmem:[#allocation2 + $0x58] sm:$0xff]
        %v641 = vld [vmem:[#allocation2 + $0x60] sm:$0xff]
        %v642 = vld [vmem:[#allocation2 + $0x68] sm:$0xff]
        %v643 = vld [vmem:[#allocation2 + $0x70] sm:$0xff]
        %v644 = vld [vmem:[#allocation2 + $0x78] sm:$0xff]
        %v645 = vld [vmem:[#allocation2 + $0x80] sm:$0xff]
        %v646 = vld [vmem:[#allocation2 + $0x88] sm:$0xff]
        %v647 = vld [vmem:[#allocation6] sm:$0xff]
        %v648 = vld [vmem:[#allocation6 + $0x8] sm:$0xff]
        %v649 = vld [vmem:[#allocation6 + $0x10] sm:$0xff]
        %v650 = vld [vmem:[#allocation6 + $0x18] sm:$0xff]
        %v651 = vld [vmem:[#allocation6 + $0x20] sm:$0xff]
        %v652 = vld [vmem:[#allocation6 + $0x28] sm:$0xff]
        %v653 = vld [vmem:[#allocation6 + $0x30] sm:$0xff]
        %v654 = vld [vmem:[#allocation6 + $0x38] sm:$0xff]
        %v655 = vld [vmem:[#allocation6 + $0x40] sm:$0xff]
        %v656 = vld [vmem:[#allocation6 + $0x48] sm:$0xff]
        %v657 = vld [vmem:[#allocation6 + $0x50] sm:$0xff]
        %v658 = vld [vmem:[#allocation6 + $0x58] sm:$0xff]
        %v659 = vld [vmem:[#allocation6 + $0x60] sm:$0xff]
        %v660 = vld [vmem:[#allocation6 + $0x68] sm:$0xff]
        %v661 = vld [vmem:[#allocation6 + $0x70] sm:$0xff]
        %v662 = vld [vmem:[#allocation6 + $0x78] sm:$0xff]
        %v663 = vld [vmem:[#allocation6 + $0x80] sm:$0xff]
        %v664 = vld [vmem:[#allocation6 + $0x88] sm:$0xff]
        %v665 = vmul.f32 %v629, %v647
        %v666 = vmul.f32 %v630, %v648
        %v667 = vmul.f32 %v631, %v649
        %v668 = vmul.f32 %v632, %v650
        %v669 = vmul.f32 %v633, %v651
        %v670 = vmul.f32 %v634, %v652
        %v671 = vmul.f32 %v635, %v653
        %v672 = vmul.f32 %v636, %v654
        %v673 = vmul.f32 %v637, %v655
        %v674 = vmul.f32 %v638, %v656
        %v675 = vmul.f32 %v639, %v657
        %v676 = vmul.f32 %v640, %v658
        %v677 = vmul.f32 %v641, %v659
        %v678 = vmul.f32 %v642, %v660
        %v679 = vmul.f32 %v643, %v661
        %v680 = vmul.f32 %v644, %v662
        %v681 = vmul.f32 %v645, %v663
        %v682 = vmul.f32 %v646, %v664
        %v683 = vld [vmem:[#allocation9] sm:$0xff]
        %v685 = vsel %vm479, %v683, 0
        %687 = vmatpush.msra.mxu0 0.0
        %688 = vmatpush.msra.mxu0 0.0
        %689 = vmatpush.msra.mxu0 0.0
        %690 = vmatpush.msra.mxu0 0.0
        %691 = vmatpush.msra.mxu0 0.0
        %692 = vmatpush.msra.mxu0 0.0
        %693 = vmatpush.msra.mxu0 0.0
        %694 = vmatpush.msra.mxu0 %v681
        %695 = vmatpush.msra.mxu0 %v679
        %696 = vmatpush.msra.mxu0 %v677
        %697 = vmatpush.msra.mxu0 %v675
        %698 = vmatpush.msra.mxu0 %v673
        %699 = vmatpush.msra.mxu0 %v671
        %700 = vmatpush.msra.mxu0 %v669
        %701 = vmatpush.msra.mxu0 %v667
        %702 = vmatpush.msra.mxu0 %v665
        %703 = vmatmul.f32.gmra.mxu0 %v685
        %v704 = vpop.f32.mrf.mxu0
        %v705 = vadd.f32 0.0, %v704
        %706 = vdwg.mxu0
        %707 = vmatpush.msra.mxu0 0.0
        %708 = vmatpush.msra.mxu0 0.0
        %709 = vmatpush.msra.mxu0 0.0
        %710 = vmatpush.msra.mxu0 0.0
        %711 = vmatpush.msra.mxu0 0.0
        %712 = vmatpush.msra.mxu0 0.0
        %713 = vmatpush.msra.mxu0 0.0
        %714 = vmatpush.msra.mxu0 %v682
        %715 = vmatpush.msra.mxu0 %v680
        %716 = vmatpush.msra.mxu0 %v678
        %717 = vmatpush.msra.mxu0 %v676
        %718 = vmatpush.msra.mxu0 %v674
        %719 = vmatpush.msra.mxu0 %v672
        %720 = vmatpush.msra.mxu0 %v670
        %721 = vmatpush.msra.mxu0 %v668
        %722 = vmatpush.msra.mxu0 %v666
        %723 = vmatmul.f32.gmra.mxu0 %v685
        %v724 = vpop.f32.mrf.mxu0
        %v725 = vadd.f32 0.0, %v724
        %726 = vdwg.mxu0
        %v727 = vxor.u32 %v705, 2147483648
        %v728 = vxor.u32 %v725, 2147483648
        %v729 = vmul.f32 %v727, 1.442695
        %v730 = vpow.pop %v729
        %v731 = vmul.f32 %v728, 1.442695
        %v732 = vpow.pop %v731
        %v733 = vadd.f32 %v730, 1.0
        %v734 = vadd.f32 %v732, 1.0
        %v735 = vrcp.pop %v733
        %v736 = vmul.f32 %v733, %v735
        %v737 = vsub.f32 1.0, %v736
        %v738 = vmul.f32 %v735, %v737
        %v739 = vadd.f32 %v735, %v738
        %vm740 = vweird.f32 %v733
        %vm741 = vweird.f32 %v735
        %vm742 = vmor %vm740, %vm741
        %v743 = vsel %vm742, %v735, %v739
        %v744 = vand.u32 2147483647, %v733
        %vm745 = vcmp.eq.f32.partialorder %v744, 8.507059e+37
        %v746 = vand.u32 %v733, 2147483648
        %v747 = vor.u32 1.1754944e-38, %v746
        %v748 = vsel %vm745, %v747, %v743
        %v749 = vmul.f32 1.0, %v748
        %v750 = vrcp.pop %v734
        %v751 = vmul.f32 %v734, %v750
        %v752 = vsub.f32 1.0, %v751
        %v753 = vmul.f32 %v750, %v752
        %v754 = vadd.f32 %v750, %v753
        %vm755 = vweird.f32 %v734
        %vm756 = vweird.f32 %v750
        %vm757 = vmor %vm755, %vm756
        %v758 = vsel %vm757, %v750, %v754
        %v759 = vand.u32 2147483647, %v734
        %vm760 = vcmp.eq.f32.partialorder %v759, 8.507059e+37
        %v761 = vand.u32 %v734, 2147483648
        %v762 = vor.u32 1.1754944e-38, %v761
        %v763 = vsel %vm760, %v762, %v758
        %v764 = vmul.f32 1.0, %v763
        %v765 = vmul.f32 %v705, %v749
        %v766 = vmul.f32 %v725, %v764
        %767 = vrot.lane.b32.xlu0 %v765, 17
        %v768 = vpop.permute.xlu0 %767
        %769 = vrot.lane.b32.xlu0 %v766, 17
        %v770 = vpop.permute.xlu0 %769
        %v771 = vsel %vm354, %v768, %v770
        %v772 = vsel %vm354, %v770, %v768
        %773 = vst [vmem:[#allocation2] sm:$0xff] %v772
        %774 = vst [vmem:[#allocation2 + $0x8] sm:$0xff] %v771
        %775 = vrot.lane.b32.xlu0 %v765, 16
        %v776 = vpop.permute.xlu0 %775
        %777 = vrot.lane.b32.xlu0 %v766, 16
        %v778 = vpop.permute.xlu0 %777
        %v779 = vsel %vm363, %v776, %v778
        %v780 = vsel %vm363, %v778, %v776
        %781 = vst [vmem:[#allocation2 + $0x10] sm:$0xff] %v780
        %782 = vst [vmem:[#allocation2 + $0x18] sm:$0xff] %v779
        %783 = vrot.lane.b32.xlu0 %v765, 15
        %v784 = vpop.permute.xlu0 %783
        %785 = vrot.lane.b32.xlu0 %v766, 15
        %v786 = vpop.permute.xlu0 %785
        %v787 = vsel %vm372, %v784, %v786
        %v788 = vsel %vm372, %v786, %v784
        %789 = vst [vmem:[#allocation2 + $0x20] sm:$0xff] %v788
        %790 = vst [vmem:[#allocation2 + $0x28] sm:$0xff] %v787
        %791 = vrot.lane.b32.xlu0 %v765, 1
        %v792 = vpop.permute.xlu0 %791
        %793 = vrot.lane.b32.xlu0 %v766, 1
        %v794 = vpop.permute.xlu0 %793
        %v795 = vsel %vm381, %v792, %v794
        %v796 = vsel %vm381, %v794, %v792
        %797 = vst [vmem:[#allocation2 + $0x30] sm:$0xff] %v796
        %798 = vst [vmem:[#allocation2 + $0x38] sm:$0xff] %v795
        %799 = vst [vmem:[#allocation2 + $0x40] sm:$0xff] %v765
        %800 = vst [vmem:[#allocation2 + $0x48] sm:$0xff] %v766
        %801 = vrot.lane.b32.xlu0 %v765, 127
        %v802 = vpop.permute.xlu0 %801
        %803 = vrot.lane.b32.xlu0 %v766, 127
        %v804 = vpop.permute.xlu0 %803
        %v805 = vsel %vm392, %v802, %v804
        %v806 = vsel %vm392, %v804, %v802
        %807 = vst [vmem:[#allocation2 + $0x50] sm:$0xff] %v805
        %808 = vst [vmem:[#allocation2 + $0x58] sm:$0xff] %v806
        %809 = vrot.lane.b32.xlu0 %v765, 113
        %v810 = vpop.permute.xlu0 %809
        %811 = vrot.lane.b32.xlu0 %v766, 113
        %v812 = vpop.permute.xlu0 %811
        %v813 = vsel %vm401, %v810, %v812
        %v814 = vsel %vm401, %v812, %v810
        %815 = vst [vmem:[#allocation2 + $0x60] sm:$0xff] %v813
        %816 = vst [vmem:[#allocation2 + $0x68] sm:$0xff] %v814
        %817 = vrot.lane.b32.xlu0 %v765, 112
        %v818 = vpop.permute.xlu0 %817
        %819 = vrot.lane.b32.xlu0 %v766, 112
        %v820 = vpop.permute.xlu0 %819
        %v821 = vsel %vm410, %v818, %v820
        %v822 = vsel %vm410, %v820, %v818
        %823 = vst [vmem:[#allocation2 + $0x70] sm:$0xff] %v821
        %824 = vst [vmem:[#allocation2 + $0x78] sm:$0xff] %v822
        %825 = vrot.lane.b32.xlu0 %v765, 111
        %v826 = vpop.permute.xlu0 %825
        %827 = vrot.lane.b32.xlu0 %v766, 111
        %v828 = vpop.permute.xlu0 %827
        %v829 = vsel %vm419, %v826, %v828
        %v830 = vsel %vm419, %v828, %v826
        %831 = vst [vmem:[#allocation2 + $0x80] sm:$0xff] %v829
        %832 = vst [vmem:[#allocation2 + $0x88] sm:$0xff] %v830
        %v833 = vld [vmem:[#allocation2] sm:$0xff]
        %v834 = vld [vmem:[#allocation2 + $0x8] sm:$0xff]
        %v835 = vld [vmem:[#allocation2 + $0x10] sm:$0xff]
        %v836 = vld [vmem:[#allocation2 + $0x18] sm:$0xff]
        %v837 = vld [vmem:[#allocation2 + $0x20] sm:$0xff]
        %v838 = vld [vmem:[#allocation2 + $0x28] sm:$0xff]
        %v839 = vld [vmem:[#allocation2 + $0x30] sm:$0xff]
        %v840 = vld [vmem:[#allocation2 + $0x38] sm:$0xff]
        %v841 = vld [vmem:[#allocation2 + $0x40] sm:$0xff]
        %v842 = vld [vmem:[#allocation2 + $0x48] sm:$0xff]
        %v843 = vld [vmem:[#allocation2 + $0x50] sm:$0xff]
        %v844 = vld [vmem:[#allocation2 + $0x58] sm:$0xff]
        %v845 = vld [vmem:[#allocation2 + $0x60] sm:$0xff]
        %v846 = vld [vmem:[#allocation2 + $0x68] sm:$0xff]
        %v847 = vld [vmem:[#allocation2 + $0x70] sm:$0xff]
        %v848 = vld [vmem:[#allocation2 + $0x78] sm:$0xff]
        %v849 = vld [vmem:[#allocation2 + $0x80] sm:$0xff]
        %v850 = vld [vmem:[#allocation2 + $0x88] sm:$0xff]
        %v851 = vld [vmem:[#allocation6] sm:$0xff]
        %v852 = vld [vmem:[#allocation6 + $0x8] sm:$0xff]
        %v853 = vld [vmem:[#allocation6 + $0x10] sm:$0xff]
        %v854 = vld [vmem:[#allocation6 + $0x18] sm:$0xff]
        %v855 = vld [vmem:[#allocation6 + $0x20] sm:$0xff]
        %v856 = vld [vmem:[#allocation6 + $0x28] sm:$0xff]
        %v857 = vld [vmem:[#allocation6 + $0x30] sm:$0xff]
        %v858 = vld [vmem:[#allocation6 + $0x38] sm:$0xff]
        %v859 = vld [vmem:[#allocation6 + $0x40] sm:$0xff]
        %v860 = vld [vmem:[#allocation6 + $0x48] sm:$0xff]
        %v861 = vld [vmem:[#allocation6 + $0x50] sm:$0xff]
        %v862 = vld [vmem:[#allocation6 + $0x58] sm:$0xff]
        %v863 = vld [vmem:[#allocation6 + $0x60] sm:$0xff]
        %v864 = vld [vmem:[#allocation6 + $0x68] sm:$0xff]
        %v865 = vld [vmem:[#allocation6 + $0x70] sm:$0xff]
        %v866 = vld [vmem:[#allocation6 + $0x78] sm:$0xff]
        %v867 = vld [vmem:[#allocation6 + $0x80] sm:$0xff]
        %v868 = vld [vmem:[#allocation6 + $0x88] sm:$0xff]
        %v869 = vmul.f32 %v833, %v851
        %v870 = vmul.f32 %v834, %v852
        %v871 = vmul.f32 %v835, %v853
        %v872 = vmul.f32 %v836, %v854
        %v873 = vmul.f32 %v837, %v855
        %v874 = vmul.f32 %v838, %v856
        %v875 = vmul.f32 %v839, %v857
        %v876 = vmul.f32 %v840, %v858
        %v877 = vmul.f32 %v841, %v859
        %v878 = vmul.f32 %v842, %v860
        %v879 = vmul.f32 %v843, %v861
        %v880 = vmul.f32 %v844, %v862
        %v881 = vmul.f32 %v845, %v863
        %v882 = vmul.f32 %v846, %v864
        %v883 = vmul.f32 %v847, %v865
        %v884 = vmul.f32 %v848, %v866
        %v885 = vmul.f32 %v849, %v867
        %v886 = vmul.f32 %v850, %v868
        %v887 = vld [vmem:[#allocation11] sm:$0xff]
        %v889 = vsel %vm479, %v887, 0
        %891 = vmatpush.msra.mxu0 0.0
        %892 = vmatpush.msra.mxu0 0.0
        %893 = vmatpush.msra.mxu0 0.0
        %894 = vmatpush.msra.mxu0 0.0
        %895 = vmatpush.msra.mxu0 0.0
        %896 = vmatpush.msra.mxu0 0.0
        %897 = vmatpush.msra.mxu0 0.0
        %898 = vmatpush.msra.mxu0 %v885
        %899 = vmatpush.msra.mxu0 %v883
        %900 = vmatpush.msra.mxu0 %v881
        %901 = vmatpush.msra.mxu0 %v879
        %902 = vmatpush.msra.mxu0 %v877
        %903 = vmatpush.msra.mxu0 %v875
        %904 = vmatpush.msra.mxu0 %v873
        %905 = vmatpush.msra.mxu0 %v871
        %906 = vmatpush.msra.mxu0 %v869
        %907 = vmatmul.f32.gmra.mxu0 %v889
        %v908 = vpop.f32.mrf.mxu0
        %v909 = vadd.f32 0.0, %v908
        %910 = vdwg.mxu0
        %911 = vmatpush.msra.mxu0 0.0
        %912 = vmatpush.msra.mxu0 0.0
        %913 = vmatpush.msra.mxu0 0.0
        %914 = vmatpush.msra.mxu0 0.0
        %915 = vmatpush.msra.mxu0 0.0
        %916 = vmatpush.msra.mxu0 0.0
        %917 = vmatpush.msra.mxu0 0.0
        %918 = vmatpush.msra.mxu0 %v886
        %919 = vmatpush.msra.mxu0 %v884
        %920 = vmatpush.msra.mxu0 %v882
        %921 = vmatpush.msra.mxu0 %v880
        %922 = vmatpush.msra.mxu0 %v878
        %923 = vmatpush.msra.mxu0 %v876
        %924 = vmatpush.msra.mxu0 %v874
        %925 = vmatpush.msra.mxu0 %v872
        %926 = vmatpush.msra.mxu0 %v870
        %927 = vmatmul.f32.gmra.mxu0 %v889
        %v928 = vpop.f32.mrf.mxu0
        %v929 = vadd.f32 0.0, %v928
        %930 = vdwg.mxu0
        %v931 = vxor.u32 %v909, 2147483648
        %v932 = vxor.u32 %v929, 2147483648
        %v933 = vmul.f32 %v931, 1.442695
        %v934 = vpow.pop %v933
        %v935 = vmul.f32 %v932, 1.442695
        %v936 = vpow.pop %v935
        %v937 = vadd.f32 %v934, 1.0
        %v938 = vadd.f32 %v936, 1.0
        %v939 = vrcp.pop %v937
        %v940 = vmul.f32 %v937, %v939
        %v941 = vsub.f32 1.0, %v940
        %v942 = vmul.f32 %v939, %v941
        %v943 = vadd.f32 %v939, %v942
        %vm944 = vweird.f32 %v937
        %vm945 = vweird.f32 %v939
        %vm946 = vmor %vm944, %vm945
        %v947 = vsel %vm946, %v939, %v943
        %v948 = vand.u32 2147483647, %v937
        %vm949 = vcmp.eq.f32.partialorder %v948, 8.507059e+37
        %v950 = vand.u32 %v937, 2147483648
        %v951 = vor.u32 1.1754944e-38, %v950
        %v952 = vsel %vm949, %v951, %v947
        %v953 = vmul.f32 1.0, %v952
        %v954 = vrcp.pop %v938
        %v955 = vmul.f32 %v938, %v954
        %v956 = vsub.f32 1.0, %v955
        %v957 = vmul.f32 %v954, %v956
        %v958 = vadd.f32 %v954, %v957
        %vm959 = vweird.f32 %v938
        %vm960 = vweird.f32 %v954
        %vm961 = vmor %vm959, %vm960
        %v962 = vsel %vm961, %v954, %v958
        %v963 = vand.u32 2147483647, %v938
        %vm964 = vcmp.eq.f32.partialorder %v963, 8.507059e+37
        %v965 = vand.u32 %v938, 2147483648
        %v966 = vor.u32 1.1754944e-38, %v965
        %v967 = vsel %vm964, %v966, %v962
        %v968 = vmul.f32 1.0, %v967
        %v969 = vmul.f32 %v909, %v953
        %v970 = vmul.f32 %v929, %v968
        %971 = vrot.lane.b32.xlu0 %v969, 17
        %v972 = vpop.permute.xlu0 %971
        %973 = vrot.lane.b32.xlu0 %v970, 17
        %v974 = vpop.permute.xlu0 %973
        %v975 = vsel %vm354, %v972, %v974
        %v976 = vsel %vm354, %v974, %v972
        %977 = vst [vmem:[#allocation2] sm:$0xff] %v976
        %978 = vst [vmem:[#allocation2 + $0x8] sm:$0xff] %v975
        %979 = vrot.lane.b32.xlu0 %v969, 16
        %v980 = vpop.permute.xlu0 %979
        %981 = vrot.lane.b32.xlu0 %v970, 16
        %v982 = vpop.permute.xlu0 %981
        %v983 = vsel %vm363, %v980, %v982
        %v984 = vsel %vm363, %v982, %v980
        %985 = vst [vmem:[#allocation2 + $0x10] sm:$0xff] %v984
        %986 = vst [vmem:[#allocation2 + $0x18] sm:$0xff] %v983
        %987 = vrot.lane.b32.xlu0 %v969, 15
        %v988 = vpop.permute.xlu0 %987
        %989 = vrot.lane.b32.xlu0 %v970, 15
        %v990 = vpop.permute.xlu0 %989
        %v991 = vsel %vm372, %v988, %v990
        %v992 = vsel %vm372, %v990, %v988
        %993 = vst [vmem:[#allocation2 + $0x20] sm:$0xff] %v992
        %994 = vst [vmem:[#allocation2 + $0x28] sm:$0xff] %v991
        %995 = vrot.lane.b32.xlu0 %v969, 1
        %v996 = vpop.permute.xlu0 %995
        %997 = vrot.lane.b32.xlu0 %v970, 1
        %v998 = vpop.permute.xlu0 %997
        %v999 = vsel %vm381, %v996, %v998
        %v1000 = vsel %vm381, %v998, %v996
        %1001 = vst [vmem:[#allocation2 + $0x30] sm:$0xff] %v1000
        %1002 = vst [vmem:[#allocation2 + $0x38] sm:$0xff] %v999
        %1003 = vst [vmem:[#allocation2 + $0x40] sm:$0xff] %v969
        %1004 = vst [vmem:[#allocation2 + $0x48] sm:$0xff] %v970
        %1005 = vrot.lane.b32.xlu0 %v969, 127
        %v1006 = vpop.permute.xlu0 %1005
        %1007 = vrot.lane.b32.xlu0 %v970, 127
        %v1008 = vpop.permute.xlu0 %1007
        %v1009 = vsel %vm392, %v1006, %v1008
        %v1010 = vsel %vm392, %v1008, %v1006
        %1011 = vst [vmem:[#allocation2 + $0x50] sm:$0xff] %v1009
        %1012 = vst [vmem:[#allocation2 + $0x58] sm:$0xff] %v1010
        %1013 = vrot.lane.b32.xlu0 %v969, 113
        %v1014 = vpop.permute.xlu0 %1013
        %1015 = vrot.lane.b32.xlu0 %v970, 113
        %v1016 = vpop.permute.xlu0 %1015
        %v1017 = vsel %vm401, %v1014, %v1016
        %v1018 = vsel %vm401, %v1016, %v1014
        %1019 = vst [vmem:[#allocation2 + $0x60] sm:$0xff] %v1017
        %1020 = vst [vmem:[#allocation2 + $0x68] sm:$0xff] %v1018
        %1021 = vrot.lane.b32.xlu0 %v969, 112
        %v1022 = vpop.permute.xlu0 %1021
        %1023 = vrot.lane.b32.xlu0 %v970, 112
        %v1024 = vpop.permute.xlu0 %1023
        %v1025 = vsel %vm410, %v1022, %v1024
        %v1026 = vsel %vm410, %v1024, %v1022
        %1027 = vst [vmem:[#allocation2 + $0x70] sm:$0xff] %v1025
        %1028 = vst [vmem:[#allocation2 + $0x78] sm:$0xff] %v1026
        %1029 = vrot.lane.b32.xlu0 %v969, 111
        %v1030 = vpop.permute.xlu0 %1029
        %1031 = vrot.lane.b32.xlu0 %v970, 111
        %v1032 = vpop.permute.xlu0 %1031
        %v1033 = vsel %vm419, %v1030, %v1032
        %v1034 = vsel %vm419, %v1032, %v1030
        %1035 = vst [vmem:[#allocation2 + $0x80] sm:$0xff] %v1033
        %1036 = vst [vmem:[#allocation2 + $0x88] sm:$0xff] %v1034
        %v1037 = vld [vmem:[#allocation2] sm:$0xff]
        %v1038 = vld [vmem:[#allocation2 + $0x8] sm:$0xff]
        %v1039 = vld [vmem:[#allocation2 + $0x10] sm:$0xff]
        %v1040 = vld [vmem:[#allocation2 + $0x18] sm:$0xff]
        %v1041 = vld [vmem:[#allocation2 + $0x20] sm:$0xff]
        %v1042 = vld [vmem:[#allocation2 + $0x28] sm:$0xff]
        %v1043 = vld [vmem:[#allocation2 + $0x30] sm:$0xff]
        %v1044 = vld [vmem:[#allocation2 + $0x38] sm:$0xff]
        %v1045 = vld [vmem:[#allocation2 + $0x40] sm:$0xff]
        %v1046 = vld [vmem:[#allocation2 + $0x48] sm:$0xff]
        %v1047 = vld [vmem:[#allocation2 + $0x50] sm:$0xff]
        %v1048 = vld [vmem:[#allocation2 + $0x58] sm:$0xff]
        %v1049 = vld [vmem:[#allocation2 + $0x60] sm:$0xff]
        %v1050 = vld [vmem:[#allocation2 + $0x68] sm:$0xff]
        %v1051 = vld [vmem:[#allocation2 + $0x70] sm:$0xff]
        %v1052 = vld [vmem:[#allocation2 + $0x78] sm:$0xff]
        %v1053 = vld [vmem:[#allocation2 + $0x80] sm:$0xff]
        %v1054 = vld [vmem:[#allocation2 + $0x88] sm:$0xff]
        %v1055 = vld [vmem:[#allocation6] sm:$0xff]
        %v1056 = vld [vmem:[#allocation6 + $0x8] sm:$0xff]
        %v1057 = vld [vmem:[#allocation6 + $0x10] sm:$0xff]
        %v1058 = vld [vmem:[#allocation6 + $0x18] sm:$0xff]
        %v1059 = vld [vmem:[#allocation6 + $0x20] sm:$0xff]
        %v1060 = vld [vmem:[#allocation6 + $0x28] sm:$0xff]
        %v1061 = vld [vmem:[#allocation6 + $0x30] sm:$0xff]
        %v1062 = vld [vmem:[#allocation6 + $0x38] sm:$0xff]
        %v1063 = vld [vmem:[#allocation6 + $0x40] sm:$0xff]
        %v1064 = vld [vmem:[#allocation6 + $0x48] sm:$0xff]
        %v1065 = vld [vmem:[#allocation6 + $0x50] sm:$0xff]
        %v1066 = vld [vmem:[#allocation6 + $0x58] sm:$0xff]
        %v1067 = vld [vmem:[#allocation6 + $0x60] sm:$0xff]
        %v1068 = vld [vmem:[#allocation6 + $0x68] sm:$0xff]
        %v1069 = vld [vmem:[#allocation6 + $0x70] sm:$0xff]
        %v1070 = vld [vmem:[#allocation6 + $0x78] sm:$0xff]
        %v1071 = vld [vmem:[#allocation6 + $0x80] sm:$0xff]
        %v1072 = vld [vmem:[#allocation6 + $0x88] sm:$0xff]
        %v1073 = vmul.f32 %v1037, %v1055
        %v1074 = vmul.f32 %v1038, %v1056
        %v1075 = vmul.f32 %v1039, %v1057
        %v1076 = vmul.f32 %v1040, %v1058
        %v1077 = vmul.f32 %v1041, %v1059
        %v1078 = vmul.f32 %v1042, %v1060
        %v1079 = vmul.f32 %v1043, %v1061
        %v1080 = vmul.f32 %v1044, %v1062
        %v1081 = vmul.f32 %v1045, %v1063
        %v1082 = vmul.f32 %v1046, %v1064
        %v1083 = vmul.f32 %v1047, %v1065
        %v1084 = vmul.f32 %v1048, %v1066
        %v1085 = vmul.f32 %v1049, %v1067
        %v1086 = vmul.f32 %v1050, %v1068
        %v1087 = vmul.f32 %v1051, %v1069
        %v1088 = vmul.f32 %v1052, %v1070
        %v1089 = vmul.f32 %v1053, %v1071
        %v1090 = vmul.f32 %v1054, %v1072
        %v1091 = vld [vmem:[#allocation12] sm:$0xff]
        %v1093 = vsel %vm479, %v1091, 0
        %1095 = vmatpush.msra.mxu0 0.0
        %1096 = vmatpush.msra.mxu0 0.0
        %1097 = vmatpush.msra.mxu0 0.0
        %1098 = vmatpush.msra.mxu0 0.0
        %1099 = vmatpush.msra.mxu0 0.0
        %1100 = vmatpush.msra.mxu0 0.0
        %1101 = vmatpush.msra.mxu0 0.0
        %1102 = vmatpush.msra.mxu0 %v1089
        %1103 = vmatpush.msra.mxu0 %v1087
        %1104 = vmatpush.msra.mxu0 %v1085
        %1105 = vmatpush.msra.mxu0 %v1083
        %1106 = vmatpush.msra.mxu0 %v1081
        %1107 = vmatpush.msra.mxu0 %v1079
        %1108 = vmatpush.msra.mxu0 %v1077
        %1109 = vmatpush.msra.mxu0 %v1075
        %1110 = vmatpush.msra.mxu0 %v1073
        %1111 = vmatmul.f32.gmra.mxu0 %v1093
        %v1112 = vpop.f32.mrf.mxu0
        %v1113 = vadd.f32 0.0, %v1112
        %1114 = vdwg.mxu0
        %1115 = vmatpush.msra.mxu0 0.0
        %1116 = vmatpush.msra.mxu0 0.0
        %1117 = vmatpush.msra.mxu0 0.0
        %1118 = vmatpush.msra.mxu0 0.0
        %1119 = vmatpush.msra.mxu0 0.0
        %1120 = vmatpush.msra.mxu0 0.0
        %1121 = vmatpush.msra.mxu0 0.0
        %1122 = vmatpush.msra.mxu0 %v1090
        %1123 = vmatpush.msra.mxu0 %v1088
        %1124 = vmatpush.msra.mxu0 %v1086
        %1125 = vmatpush.msra.mxu0 %v1084
        %1126 = vmatpush.msra.mxu0 %v1082
        %1127 = vmatpush.msra.mxu0 %v1080
        %1128 = vmatpush.msra.mxu0 %v1078
        %1129 = vmatpush.msra.mxu0 %v1076
        %1130 = vmatpush.msra.mxu0 %v1074
        %1131 = vmatmul.f32.gmra.mxu0 %v1093
        %v1132 = vpop.f32.mrf.mxu0
        %v1133 = vadd.f32 0.0, %v1132
        %1134 = vdwg.mxu0
        %v1135 = vxor.u32 %v1113, 2147483648
        %v1136 = vxor.u32 %v1133, 2147483648
        %v1137 = vmul.f32 %v1135, 1.442695
        %v1138 = vpow.pop %v1137
        %v1139 = vmul.f32 %v1136, 1.442695
        %v1140 = vpow.pop %v1139
        %v1141 = vadd.f32 %v1138, 1.0
        %v1142 = vadd.f32 %v1140, 1.0
        %v1143 = vrcp.pop %v1141
        %v1144 = vmul.f32 %v1141, %v1143
        %v1145 = vsub.f32 1.0, %v1144
        %v1146 = vmul.f32 %v1143, %v1145
        %v1147 = vadd.f32 %v1143, %v1146
        %vm1148 = vweird.f32 %v1141
        %vm1149 = vweird.f32 %v1143
        %vm1150 = vmor %vm1148, %vm1149
        %v1151 = vsel %vm1150, %v1143, %v1147
        %v1152 = vand.u32 2147483647, %v1141
        %vm1153 = vcmp.eq.f32.partialorder %v1152, 8.507059e+37
        %v1154 = vand.u32 %v1141, 2147483648
        %v1155 = vor.u32 1.1754944e-38, %v1154
        %v1156 = vsel %vm1153, %v1155, %v1151
        %v1157 = vmul.f32 1.0, %v1156
        %v1158 = vrcp.pop %v1142
        %v1159 = vmul.f32 %v1142, %v1158
        %v1160 = vsub.f32 1.0, %v1159
        %v1161 = vmul.f32 %v1158, %v1160
        %v1162 = vadd.f32 %v1158, %v1161
        %vm1163 = vweird.f32 %v1142
        %vm1164 = vweird.f32 %v1158
        %vm1165 = vmor %vm1163, %vm1164
        %v1166 = vsel %vm1165, %v1158, %v1162
        %v1167 = vand.u32 2147483647, %v1142
        %vm1168 = vcmp.eq.f32.partialorder %v1167, 8.507059e+37
        %v1169 = vand.u32 %v1142, 2147483648
        %v1170 = vor.u32 1.1754944e-38, %v1169
        %v1171 = vsel %vm1168, %v1170, %v1166
        %v1172 = vmul.f32 1.0, %v1171
        %1173 = vmatpush.xpose.msra.mxu0 0.0
        %1174 = vmatpush.xpose.msra.mxu0 0.0
        %1175 = vmatpush.xpose.msra.mxu0 0.0
        %1176 = vmatpush.xpose.msra.mxu0 0.0
        %1177 = vmatpush.xpose.msra.mxu0 0.0
        %1178 = vmatpush.xpose.msra.mxu0 0.0
        %1179 = vmatpush.xpose.msra.mxu0 0.0
        %1180 = vmatpush.xpose.msra.mxu0 0.0
        %1181 = vmatpush.xpose.msra.mxu0 0.0
        %1182 = vmatpush.xpose.msra.mxu0 0.0
        %1183 = vmatpush.xpose.msra.mxu0 0.0
        %1184 = vmatpush.xpose.msra.mxu0 0.0
        %1185 = vmatpush.xpose.msra.mxu0 0.0
        %1186 = vmatpush.xpose.msra.mxu0 0.0
        %1187 = vmatpush.xpose.msra.mxu0 0.0
        %1188 = vmatpush.xpose.msra.mxu0 %v346
        %1189 = vmatmul.f32.gmra.mxu0 %v1157
        %v1190 = vpop.f32.mrf.mxu0
        %v1191 = vadd.f32 0.0, %v1190
        %1192 = vdwg.mxu0
        %1193 = vmatpush.xpose.msra.mxu0 0.0
        %1194 = vmatpush.xpose.msra.mxu0 0.0
        %1195 = vmatpush.xpose.msra.mxu0 0.0
        %1196 = vmatpush.xpose.msra.mxu0 0.0
        %1197 = vmatpush.xpose.msra.mxu0 0.0
        %1198 = vmatpush.xpose.msra.mxu0 0.0
        %1199 = vmatpush.xpose.msra.mxu0 0.0
        %1200 = vmatpush.xpose.msra.mxu0 0.0
        %1201 = vmatpush.xpose.msra.mxu0 0.0
        %1202 = vmatpush.xpose.msra.mxu0 0.0
        %1203 = vmatpush.xpose.msra.mxu0 0.0
        %1204 = vmatpush.xpose.msra.mxu0 0.0
        %1205 = vmatpush.xpose.msra.mxu0 0.0
        %1206 = vmatpush.xpose.msra.mxu0 0.0
        %1207 = vmatpush.xpose.msra.mxu0 0.0
        %1208 = vmatpush.xpose.msra.mxu0 %v347
        %1209 = vmatmul.f32.gmra.mxu0 %v1172
        %v1210 = vpop.f32.mrf.mxu0
        %v1211 = vadd.f32 %v1191, %v1210
        %1212 = vdwg.mxu0
        %v1213 = vmul.f32 %v1211, 0.00390625
        %vm1214 = vcmask 64512
        %1215 = vst.msk [vmem:[%s344] sm:$0xff] %vm1214, %v1213
        %s1216 = sand.u32 %s165, 1
        %s1217 = scalar_lea.sflag [#allocation5], %s1216
        %s1218 = sand.u32 %s165, 1
        %s1219 = smul.addr %s1218, 8
        %s1220 = scalar_lea.vmem [#allocation14], %s1219
        // Predicated region
        $region69: #{tpu_custom_call.1} parent=43 // pred_check
          %p1221 = pneg %p175
        $region70: #{tpu_custom_call.1} parent=43 // pred_check_branch
          %1223 = sbr.rel (%p1221) target = $region72
        $region71: #{tpu_custom_call.1} parent=43 // pred_region
          %1225 = vsyncadd %s1217, 0
          %s1226 = smul.addr %s26, 8
          %s1227 = scalar_lea.hbm %s6, %s1226
          %s1229 = sshll.u32 %s1220, 4
          %s1230 = int_to_ptr.vmem [resolvable:$true] %s1229
          %s1231 = sshll.u32 %s1227, 4
          %s1232 = int_to_ptr.hbm [resolvable:$true] %s1231
          %1234 = dma.vmem_to_hbm [thread:$0]  %s1230, 128, %s1232, %s1217
        $region72: #{tpu_custom_call.1} parent=43 // pred_fallthru
          _
      $region44: #{tpu_custom_call.1} parent=5 // pred_fallthru
        _
      %p1235 = scmp.le.s32.totalorder 2, %s21
      // Predicated region
      $region73: #{tpu_custom_call.1} parent=5 // pred_check
        %p1236 = pneg %p1235
      $region74: #{tpu_custom_call.1} parent=5 // pred_check_branch
        %1238 = sbr.rel (%p1236) target = $region76
      $region75: #{tpu_custom_call.1} parent=5 // pred_region
        %s1239 = ssub.s32 %s21, 2
        // Predicated region
        $region77: #{tpu_custom_call.1} parent=75 // pred_check
          %p1240 = pneg %p181
        $region78: #{tpu_custom_call.1} parent=75 // pred_check_branch
          %1242 = sbr.rel (%p1240) target = $region80
        $region79: #{tpu_custom_call.1} parent=75 // pred_region
          %s1243 = sand.u32 %s166, 1
          %s1244 = scalar_lea.sflag [#allocation5], %s1243
          %s1245 = sand.u32 %s166, 1
          %s1246 = smul.addr %s1245, 8
          %s1247 = scalar_lea.vmem [#allocation14], %s1246
          %1249 = dma.done %s1244, 128
        $region80: #{tpu_custom_call.1} parent=75 // pred_fallthru
          _
      $region76: #{tpu_custom_call.1} parent=5 // pred_fallthru
        _
    $region6: #{tpu_custom_call.1} parent=1 // loop_footer
      %s25 = sadd.s32 1, %s21
    $region7: #{tpu_custom_call.1} parent=1 // loop_footer_branch
      %20 = sbr.rel target = $region3
    $region8: #{tpu_custom_call.1} parent=1 // loop_exit
      _
    %1250 = vsyncpa [#allocation4], 1
    %s1251 = scalar_lea.sflag [#allocation4], 1
    %1252 = vsyncpa %s1251, 1
    %1253 = vsyncpa [#allocation7], 1
    %1254 = vsyncpa [#allocation10], 1
    %1255 = vsyncpa [#allocation13], 1
    %1256 = vsyncpa [#allocation5], 1
    %s1257 = scalar_lea.sflag [#allocation5], 1
    %1258 = vsyncpa %s1257, 1

</llo_original>
